<compile_context>
chip_gen: v5e
topology: v5e:2x2
jax: 0.10.0
libtpu: 0.0.40
codegen_flags: <defaults>
</compile_context>

<pallas_src>
import functools

import jax
import jax.numpy as jnp
from jax.experimental import pallas as pl
from jax.experimental.pallas import tpu as pltpu

IN_DIM = 32 * 32 * 3   # 3072
HID_DIM = 128
LANE = 128
SUBLANE = 8
OUT_CHUNK = 1024       # column chunk of the last Linear (3 chunks over 3072)


def _round_up(x, m):
    return (x + m - 1) // m * m


def _cdiv(a, b):
    return (a + b - 1) // b


def _chip_config():
    """Generation-specific tile size / VMEM budget / MXU operand dtype.

    v5e / v6e : 128 MiB VMEM, 0.8-1.4 TB/s HBM  -> TB<=1024, 96 MiB scoped
                VMEM, f32 MXU operands (MXU is nowhere near critical).
    v7x       : 64 MiB VMEM per TensorCore, 3.2 TB/s HBM -> TB<=512, 48 MiB,
                bf16 MXU operands (f32 multi-pass MXU would be co-critical).
    unknown   : conservative v7x-style sizing with f32 operands.
    """
    kind = ""
    try:
        kind = jax.devices()[0].device_kind.lower()
    except Exception:
        pass
    vmem_bytes = 0
    try:
        vmem_bytes = int(getattr(pltpu.get_tpu_info(), "vmem_capacity_bytes", 0))
    except Exception:
        pass
    if not vmem_bytes:
        vmem_bytes = (128 if ("v5" in kind or "v6" in kind) else 64) * 1024 * 1024
    if vmem_bytes > 64 * 1024 * 1024:                      # v5e / v6e class
        return {"tb_max": 1024, "vmem_limit": 96 * 1024 * 1024,
                "bf16_matmul": False}
    return {"tb_max": 512, "vmem_limit": 48 * 1024 * 1024,  # v7x / unknown
            "bf16_matmul": "7" in kind}


_CFG = _chip_config()


def _ae_kernel(x_ref, w1_ref, b1_ref, w2_ref, b2_ref,
               w3_ref, b3_ref, w4_ref, b4_ref,
               recon_ref, z_ref):
    """Autoencoder forward on one (TB, 3072) batch tile.

    x_ref:  (TB, 3072)  f32 flattened input tile
    w1: (3072, 128) b1: (1, 128)       encoder layer 1
    w2: (128, Lp)   b2: (1, Lp)        encoder layer 2 (latent, lane-padded)
    w3: (Lp, 128)   b3: (1, 128)       decoder layer 1
    w4: (128, 3072) b4: (1, 3072)      decoder layer 2
    Weights are f32 or bf16 (MXU operand dtype); biases/outputs are f32.
    recon_ref: (TB, 3072)  z_ref: (TB, Lp)
    """
    cdt = w1_ref.dtype            # MXU operand dtype (f32 or bf16)

    x = x_ref[...].astype(cdt)

    # ---- Encoder ----
    h1 = jnp.maximum(
        jnp.dot(x, w1_ref[...], preferred_element_type=jnp.float32)
        + b1_ref[...],
        0.0)                                                    # ReLU (f32)
    z = jnp.dot(h1.astype(cdt), w2_ref[...],
                preferred_element_type=jnp.float32) + b2_ref[...]

    # Store z now so its writeback overlaps the decoder compute. Padded latent
    # columns are exactly zero (zero w2/b2 columns), sliced off outside.
    z_ref[...] = z.astype(z_ref.dtype)

    # ---- Decoder ----
    # Padded rows of w3 are zero, so the latent padding is a mathematical no-op.
    h2 = jnp.maximum(
        jnp.dot(z.astype(cdt), w3_ref[...],
                preferred_element_type=jnp.float32) + b3_ref[...],
        0.0)                                                    # ReLU (f32)
    h2c = h2.astype(cdt)

    # Final Linear + Tanh chunked over output columns: keeps the (TB, 3072)
    # f32 intermediate out of VMEM and overlaps tanh (EUP) + stores with the
    # next chunk's MXU work instead of a serial tail.
    for c in range(IN_DIM // OUT_CHUNK):
        lo = c * OUT_CHUNK
        hi = lo + OUT_CHUNK
        r = jnp.dot(h2c, w4_ref[:, lo:hi],
                    preferred_element_type=jnp.float32) + b4_ref[:, lo:hi]
        recon_ref[:, lo:hi] = jnp.tanh(r).astype(recon_ref.dtype)


def init_params(key, latent_dim):
    """Init mimicking torch.nn.Linear default (U(-1/sqrt(in), 1/sqrt(in))).

    Weights are stored as (in, out) so the kernel can do x @ W directly.
    """
    ks = jax.random.split(key, 8)

    def linear(kw, kb, fan_in, fan_out):
        bound = 1.0 / jnp.sqrt(fan_in)
        w = jax.random.uniform(kw, (fan_in, fan_out), jnp.float32, -bound, bound)
        b = jax.random.uniform(kb, (1, fan_out), jnp.float32, -bound, bound)
        return w, b

    w1, b1 = linear(ks[0], ks[1], IN_DIM, HID_DIM)
    w2, b2 = linear(ks[2], ks[3], HID_DIM, latent_dim)
    w3, b3 = linear(ks[4], ks[5], latent_dim, HID_DIM)
    w4, b4 = linear(ks[6], ks[7], HID_DIM, IN_DIM)
    return (w1, b1, w2, b2, w3, b3, w4, b4)


@functools.partial(jax.jit, static_argnames=("latent_dim",))
def autoencoder_forward(x, params, latent_dim):
    """x: (B, 3, 32, 32) float32 (NCHW).  Returns (x_reconstructed, z)."""
    B = x.shape[0]
    x_flat = x.reshape(B, IN_DIM)   # C*H*W order == torch.nn.Flatten on NCHW

    w1, b1, w2, b2, w3, b3, w4, b4 = params

    # Zero-pad the latent dimension to a full 128-lane slab (exact padding:
    # padded z columns are identically zero; padded w3 rows contribute zero),
    # so the z output is a lane-dense unmasked store.
    L_pad = _round_up(latent_dim, LANE)
    if L_pad != latent_dim:
        w2p = jnp.pad(w2, ((0, 0), (0, L_pad - latent_dim)))
        b2p = jnp.pad(b2, ((0, 0), (0, L_pad - latent_dim)))
        w3p = jnp.pad(w3, ((0, L_pad - latent_dim), (0, 0)))
    else:
        w2p, b2p, w3p = w2, b2, w3

    # MXU operand dtype: bf16 on v7x, f32 elsewhere. Biases / outputs stay f32.
    cdt = jnp.bfloat16 if _CFG["bf16_matmul"] else jnp.float32
    w1c = w1.astype(cdt)
    w2c = w2p.astype(cdt)
    w3c = w3p.astype(cdt)
    w4c = w4.astype(cdt)

    # Adaptive batch tiling:
    #  * bound padding waste: TB = round_up(cdiv(B, n_tiles), 8)
    #  * force >= 2 grid steps whenever B > 8 so the DMA pipeline runs and
    #    ("parallel",) semantics can shard across v7x's two TensorCores.
    tb_max = _CFG["tb_max"]
    n_tiles = max(_cdiv(B, tb_max), 2) if B > SUBLANE else 1
    TB = _round_up(_cdiv(B, n_tiles), SUBLANE)
    B_pad = _round_up(B, TB)
    if B_pad != B:
        x_flat = jnp.pad(x_flat, ((0, B_pad - B), (0, 0)))
    grid = (B_pad // TB,)

    def tile_spec(n_cols):
        # Row-tiled over the batch grid axis -> double-buffered DMA/compute.
        return pl.BlockSpec((TB, n_cols), lambda i: (i, 0))

    def const_spec(shape):
        # Constant block index -> fetched once, VMEM-resident across the grid.
        return pl.BlockSpec(shape, lambda i: (0, 0))

    recon_flat, z_pad = pl.pallas_call(
        _ae_kernel,
        out_shape=(
            jax.ShapeDtypeStruct((B_pad, IN_DIM), jnp.float32),
            jax.ShapeDtypeStruct((B_pad, L_pad), jnp.float32),
        ),
        grid=grid,
        in_specs=[
            tile_spec(IN_DIM),
            const_spec((IN_DIM, HID_DIM)), const_spec((1, HID_DIM)),
            const_spec((HID_DIM, L_pad)), const_spec((1, L_pad)),
            const_spec((L_pad, HID_DIM)), const_spec((1, HID_DIM)),
            const_spec((HID_DIM, IN_DIM)), const_spec((1, IN_DIM)),
        ],
        out_specs=(
            tile_spec(IN_DIM),
            tile_spec(L_pad),
        ),
        compiler_params=pltpu.CompilerParams(
            dimension_semantics=("parallel",),
            vmem_limit_bytes=_CFG["vmem_limit"],
        ),
    )(x_flat, w1c, b1, w2c, b2p, w3c, b3, w4c, b4)

    x_reconstructed = recon_flat[:B].reshape(B, 3, 32, 32)
    z = z_pad[:B, :latent_dim]
    return x_reconstructed, z


def _reference_forward(x, params):
    """Pure-JAX f32 reference for a correctness sanity check."""
    w1, b1, w2, b2, w3, b3, w4, b4 = params
    B = x.shape[0]
    xf = x.reshape(B, IN_DIM)
    h1 = jnp.maximum(xf @ w1 + b1, 0.0)
    z = h1 @ w2 + b2
    h2 = jnp.maximum(z @ w3 + b3, 0.0)
    r = jnp.tanh(h2 @ w4 + b4)
    return r.reshape(B, 3, 32, 32), z


if __name__ == "__main__":
    latent_dim = 32

    key = jax.random.PRNGKey(0)
    k_params, k_x = jax.random.split(key)
    params = init_params(k_params, latent_dim)

    # Looser tolerance only when the v7x bf16-operand path is active.
    tol = 3e-2 if _CFG["bf16_matmul"] else 1e-4

    for B in (2, 16):   # B=16 exercises the multi-tile (>=2 grid steps) path
        x = jax.random.normal(jax.random.fold_in(k_x, B), (B, 3, 32, 32),
                              dtype=jnp.float32)
        x_rec, z = autoencoder_forward(x, params, latent_dim)
        jax.block_until_ready((x_rec, z))

        x_rec_ref, z_ref = _reference_forward(x, params)
        assert x_rec.shape == (B, 3, 32, 32) and z.shape == (B, latent_dim)
        assert jnp.allclose(x_rec, x_rec_ref, atol=tol, rtol=tol)
        assert jnp.allclose(z, z_ref, atol=tol, rtol=tol)

    print("KERNEL_OK")
</pallas_src>

<mosaic_0001>
module attributes {stable_mosaic.version = 11 : i64} {
  func.func @_ae_kernel(%arg0: i32, %arg1: memref<8x3072xf32, #tpu.memory_space<vmem>>, %arg2: memref<3072x128xf32, #tpu.memory_space<vmem>>, %arg3: memref<1x128xf32, #tpu.memory_space<vmem>>, %arg4: memref<128x128xf32, #tpu.memory_space<vmem>>, %arg5: memref<1x128xf32, #tpu.memory_space<vmem>>, %arg6: memref<128x128xf32, #tpu.memory_space<vmem>>, %arg7: memref<1x128xf32, #tpu.memory_space<vmem>>, %arg8: memref<128x3072xf32, #tpu.memory_space<vmem>>, %arg9: memref<1x3072xf32, #tpu.memory_space<vmem>>, %arg10: memref<8x3072xf32, #tpu.memory_space<vmem>>, %arg11: memref<8x128xf32, #tpu.memory_space<vmem>>) attributes {dimension_semantics = [#tpu.dimension_semantics<parallel>], iteration_bounds = array<i64: 1>, scalar_prefetch = 0 : i64, scratch_operands = 0 : i64, tpu.core_type = #tpu.core_type<tc>, window_params = [{transform_indices = @transform_0, window_bounds = array<i64: 8, 3072>}, {pipeline_mode = #tpu.pipeline_mode<synchronous>, transform_indices = @transform_1, window_bounds = array<i64: 3072, 128>}, {pipeline_mode = #tpu.pipeline_mode<synchronous>, transform_indices = @transform_2, window_bounds = array<i64: 1, 128>}, {pipeline_mode = #tpu.pipeline_mode<synchronous>, transform_indices = @transform_3, window_bounds = array<i64: 128, 128>}, {pipeline_mode = #tpu.pipeline_mode<synchronous>, transform_indices = @transform_4, window_bounds = array<i64: 1, 128>}, {pipeline_mode = #tpu.pipeline_mode<synchronous>, transform_indices = @transform_5, window_bounds = array<i64: 128, 128>}, {pipeline_mode = #tpu.pipeline_mode<synchronous>, transform_indices = @transform_6, window_bounds = array<i64: 1, 128>}, {pipeline_mode = #tpu.pipeline_mode<synchronous>, transform_indices = @transform_7, window_bounds = array<i64: 128, 3072>}, {pipeline_mode = #tpu.pipeline_mode<synchronous>, transform_indices = @transform_8, window_bounds = array<i64: 1, 3072>}, {transform_indices = @transform_9, window_bounds = array<i64: 8, 3072>}, {transform_indices = @transform_10, window_bounds = array<i64: 8, 128>}]} {
    %c0 = arith.constant 0 : index
    %c0_0 = arith.constant 0 : index
    %0 = vector.load %arg1[%c0, %c0_0] : memref<8x3072xf32, #tpu.memory_space<vmem>>, vector<8x3072xf32>
    %c0_1 = arith.constant 0 : index
    %c0_2 = arith.constant 0 : index
    %1 = vector.load %arg2[%c0_1, %c0_2] : memref<3072x128xf32, #tpu.memory_space<vmem>>, vector<3072x128xf32>
    %cst = arith.constant dense<0.000000e+00> : vector<8x128xf32>
    %2 = tpu.matmul %0, %1, %cst {dimension_numbers = #tpu.dot_dimension_numbers<[1], [0], [0], [1], [0, 0, 1, 1], [], []>} : vector<8x3072xf32>, vector<3072x128xf32>, vector<8x128xf32> -> vector<8x128xf32>
    %c0_3 = arith.constant 0 : index
    %c0_4 = arith.constant 0 : index
    %3 = vector.load %arg3[%c0_3, %c0_4] : memref<1x128xf32, #tpu.memory_space<vmem>>, vector<1x128xf32>
    %4 = vector.broadcast %3 : vector<1x128xf32> to vector<8x128xf32>
    %5 = arith.addf %2, %4 : vector<8x128xf32>
    %cst_5 = arith.constant 0.000000e+00 : f32
    %6 = vector.broadcast %cst_5 : f32 to vector<8x128xf32>
    %7 = arith.maximumf %5, %6 : vector<8x128xf32>
    %c0_6 = arith.constant 0 : index
    %c0_7 = arith.constant 0 : index
    %8 = vector.load %arg4[%c0_6, %c0_7] : memref<128x128xf32, #tpu.memory_space<vmem>>, vector<128x128xf32>
    %cst_8 = arith.constant dense<0.000000e+00> : vector<8x128xf32>
    %9 = tpu.matmul %7, %8, %cst_8 {dimension_numbers = #tpu.dot_dimension_numbers<[1], [0], [0], [1], [0, 0, 1, 1], [], []>} : vector<8x128xf32>, vector<128x128xf32>, vector<8x128xf32> -> vector<8x128xf32>
    %c0_9 = arith.constant 0 : index
    %c0_10 = arith.constant 0 : index
    %10 = vector.load %arg5[%c0_9, %c0_10] : memref<1x128xf32, #tpu.memory_space<vmem>>, vector<1x128xf32>
    %11 = vector.broadcast %10 : vector<1x128xf32> to vector<8x128xf32>
    %12 = arith.addf %9, %11 : vector<8x128xf32>
    %c0_11 = arith.constant 0 : index
    %c0_12 = arith.constant 0 : index
    %13 = vector.load %arg11[%c0_11, %c0_12] : memref<8x128xf32, #tpu.memory_space<vmem>>, vector<8x128xf32>
    tpu.vector_store %arg11[%c0_11, %c0_12], %12 {strides = array<i32>} : memref<8x128xf32, #tpu.memory_space<vmem>>, vector<8x128xf32>,
    %c0_13 = arith.constant 0 : index
    %c0_14 = arith.constant 0 : index
    %14 = vector.load %arg6[%c0_13, %c0_14] : memref<128x128xf32, #tpu.memory_space<vmem>>, vector<128x128xf32>
    %cst_15 = arith.constant dense<0.000000e+00> : vector<8x128xf32>
    %15 = tpu.matmul %12, %14, %cst_15 {dimension_numbers = #tpu.dot_dimension_numbers<[1], [0], [0], [1], [0, 0, 1, 1], [], []>} : vector<8x128xf32>, vector<128x128xf32>, vector<8x128xf32> -> vector<8x128xf32>
    %c0_16 = arith.constant 0 : index
    %c0_17 = arith.constant 0 : index
    %16 = vector.load %arg7[%c0_16, %c0_17] : memref<1x128xf32, #tpu.memory_space<vmem>>, vector<1x128xf32>
    %17 = vector.broadcast %16 : vector<1x128xf32> to vector<8x128xf32>
    %18 = arith.addf %15, %17 : vector<8x128xf32>
    %cst_18 = arith.constant 0.000000e+00 : f32
    %19 = vector.broadcast %cst_18 : f32 to vector<8x128xf32>
    %20 = arith.maximumf %18, %19 : vector<8x128xf32>
    %c0_19 = arith.constant 0 : index
    %c0_20 = arith.constant 0 : index
    %21 = vector.load %arg8[%c0_19, %c0_20] : memref<128x3072xf32, #tpu.memory_space<vmem>>, vector<128x1024xf32>
    %cst_21 = arith.constant dense<0.000000e+00> : vector<8x1024xf32>
    %22 = tpu.matmul %20, %21, %cst_21 {dimension_numbers = #tpu.dot_dimension_numbers<[1], [0], [0], [1], [0, 0, 1, 1], [], []>} : vector<8x128xf32>, vector<128x1024xf32>, vector<8x1024xf32> -> vector<8x1024xf32>
    %c0_22 = arith.constant 0 : index
    %c0_23 = arith.constant 0 : index
    %23 = vector.load %arg9[%c0_22, %c0_23] : memref<1x3072xf32, #tpu.memory_space<vmem>>, vector<1x1024xf32>
    %24 = vector.broadcast %23 : vector<1x1024xf32> to vector<8x1024xf32>
    %25 = arith.addf %22, %24 : vector<8x1024xf32>
    %26 = math.tanh %25 : vector<8x1024xf32>
    %c0_24 = arith.constant 0 : index
    %c0_25 = arith.constant 0 : index
    %27 = vector.load %arg10[%c0_24, %c0_25] : memref<8x3072xf32, #tpu.memory_space<vmem>>, vector<8x1024xf32>
    tpu.vector_store %arg10[%c0_24, %c0_25], %26 {strides = array<i32>} : memref<8x3072xf32, #tpu.memory_space<vmem>>, vector<8x1024xf32>,
    %c0_26 = arith.constant 0 : index
    %c1024 = arith.constant 1024 : index
    %28 = vector.load %arg8[%c0_26, %c1024] : memref<128x3072xf32, #tpu.memory_space<vmem>>, vector<128x1024xf32>
    %cst_27 = arith.constant dense<0.000000e+00> : vector<8x1024xf32>
    %29 = tpu.matmul %20, %28, %cst_27 {dimension_numbers = #tpu.dot_dimension_numbers<[1], [0], [0], [1], [0, 0, 1, 1], [], []>} : vector<8x128xf32>, vector<128x1024xf32>, vector<8x1024xf32> -> vector<8x1024xf32>
    %c0_28 = arith.constant 0 : index
    %c1024_29 = arith.constant 1024 : index
    %30 = vector.load %arg9[%c0_28, %c1024_29] : memref<1x3072xf32, #tpu.memory_space<vmem>>, vector<1x1024xf32>
    %31 = vector.broadcast %30 : vector<1x1024xf32> to vector<8x1024xf32>
    %32 = arith.addf %29, %31 : vector<8x1024xf32>
    %33 = math.tanh %32 : vector<8x1024xf32>
    %c0_30 = arith.constant 0 : index
    %c1024_31 = arith.constant 1024 : index
    %34 = vector.load %arg10[%c0_30, %c1024_31] : memref<8x3072xf32, #tpu.memory_space<vmem>>, vector<8x1024xf32>
    tpu.vector_store %arg10[%c0_30, %c1024_31], %33 {strides = array<i32>} : memref<8x3072xf32, #tpu.memory_space<vmem>>, vector<8x1024xf32>,
    %c0_32 = arith.constant 0 : index
    %c2048 = arith.constant 2048 : index
    %35 = vector.load %arg8[%c0_32, %c2048] : memref<128x3072xf32, #tpu.memory_space<vmem>>, vector<128x1024xf32>
    %cst_33 = arith.constant dense<0.000000e+00> : vector<8x1024xf32>
    %36 = tpu.matmul %20, %35, %cst_33 {dimension_numbers = #tpu.dot_dimension_numbers<[1], [0], [0], [1], [0, 0, 1, 1], [], []>} : vector<8x128xf32>, vector<128x1024xf32>, vector<8x1024xf32> -> vector<8x1024xf32>
    %c0_34 = arith.constant 0 : index
    %c2048_35 = arith.constant 2048 : index
    %37 = vector.load %arg9[%c0_34, %c2048_35] : memref<1x3072xf32, #tpu.memory_space<vmem>>, vector<1x1024xf32>
    %38 = vector.broadcast %37 : vector<1x1024xf32> to vector<8x1024xf32>
    %39 = arith.addf %36, %38 : vector<8x1024xf32>
    %40 = math.tanh %39 : vector<8x1024xf32>
    %c0_36 = arith.constant 0 : index
    %c2048_37 = arith.constant 2048 : index
    %41 = vector.load %arg10[%c0_36, %c2048_37] : memref<8x3072xf32, #tpu.memory_space<vmem>>, vector<8x1024xf32>
    tpu.vector_store %arg10[%c0_36, %c2048_37], %40 {strides = array<i32>} : memref<8x3072xf32, #tpu.memory_space<vmem>>, vector<8x1024xf32>,
    return
  }
  func.func @transform_0(%arg0: i32) -> (i32, i32) {
    %c0_i32 = arith.constant 0 : i32
    %c0_i32_0 = arith.constant 0 : i32
    return %arg0, %c0_i32 : i32, i32
  }
  func.func @transform_1(%arg0: i32) -> (i32, i32) {
    %c0_i32 = arith.constant 0 : i32
    %c0_i32_0 = arith.constant 0 : i32
    %c0_i32_1 = arith.constant 0 : i32
    return %c0_i32, %c0_i32_0 : i32, i32
  }
  func.func @transform_2(%arg0: i32) -> (i32, i32) {
    %c0_i32 = arith.constant 0 : i32
    %c0_i32_0 = arith.constant 0 : i32
    %c0_i32_1 = arith.constant 0 : i32
    return %c0_i32, %c0_i32_0 : i32, i32
  }
  func.func @transform_3(%arg0: i32) -> (i32, i32) {
    %c0_i32 = arith.constant 0 : i32
    %c0_i32_0 = arith.constant 0 : i32
    %c0_i32_1 = arith.constant 0 : i32
    return %c0_i32, %c0_i32_0 : i32, i32
  }
  func.func @transform_4(%arg0: i32) -> (i32, i32) {
    %c0_i32 = arith.constant 0 : i32
    %c0_i32_0 = arith.constant 0 : i32
    %c0_i32_1 = arith.constant 0 : i32
    return %c0_i32, %c0_i32_0 : i32, i32
  }
  func.func @transform_5(%arg0: i32) -> (i32, i32) {
    %c0_i32 = arith.constant 0 : i32
    %c0_i32_0 = arith.constant 0 : i32
    %c0_i32_1 = arith.constant 0 : i32
    return %c0_i32, %c0_i32_0 : i32, i32
  }
  func.func @transform_6(%arg0: i32) -> (i32, i32) {
    %c0_i32 = arith.constant 0 : i32
    %c0_i32_0 = arith.constant 0 : i32
    %c0_i32_1 = arith.constant 0 : i32
    return %c0_i32, %c0_i32_0 : i32, i32
  }
  func.func @transform_7(%arg0: i32) -> (i32, i32) {
    %c0_i32 = arith.constant 0 : i32
    %c0_i32_0 = arith.constant 0 : i32
    %c0_i32_1 = arith.constant 0 : i32
    return %c0_i32, %c0_i32_0 : i32, i32
  }
  func.func @transform_8(%arg0: i32) -> (i32, i32) {
    %c0_i32 = arith.constant 0 : i32
    %c0_i32_0 = arith.constant 0 : i32
    %c0_i32_1 = arith.constant 0 : i32
    return %c0_i32, %c0_i32_0 : i32, i32
  }
  func.func @transform_9(%arg0: i32) -> (i32, i32) {
    %c0_i32 = arith.constant 0 : i32
    %c0_i32_0 = arith.constant 0 : i32
    return %arg0, %c0_i32 : i32, i32
  }
  func.func @transform_10(%arg0: i32) -> (i32, i32) {
    %c0_i32 = arith.constant 0 : i32
    %c0_i32_0 = arith.constant 0 : i32
    return %arg0, %c0_i32 : i32, i32
  }
}

</mosaic_0001>

<llo_original>
// kernel: autoencoder_forward.1
$region0: #{autoencoder_forward.1}
  #allocation0 [shape = 'u32[]', space=smem, size = 0x4, offset = 0x4, fixed_abs, tag = 'smem constant byte address 0x4 - core index']
  #allocation1 [shape = 'u32[72,128]{1,0:T(1,128)}', space=vmem, size = 0x9000, scoped, tag = 'internal scratch']
  %s0 = inlined_call_operand.vmem [shape: f32[8,3072], index: 0, kind: input, shape index: {}]
  %s1 = inlined_call_operand.hbm [shape: f32[3072,128], index: 1, kind: input, shape index: {}]
  %s2 = inlined_call_operand.hbm [shape: f32[1,128], index: 2, kind: input, shape index: {}]
  %s3 = inlined_call_operand.vmem [shape: f32[128,128], index: 3, kind: input, shape index: {}]
  %s4 = inlined_call_operand.vmem [shape: f32[1,128], index: 4, kind: input, shape index: {}]
  %s5 = inlined_call_operand.vmem [shape: f32[128,128], index: 5, kind: input, shape index: {}]
  %s6 = inlined_call_operand.hbm [shape: f32[1,128], index: 6, kind: input, shape index: {}]
  %s7 = inlined_call_operand.hbm [shape: f32[128,3072], index: 7, kind: input, shape index: {}]
  %s8 = inlined_call_operand.hbm [shape: f32[1,3072], index: 8, kind: input, shape index: {}]
  %s9 = inlined_call_operand.vmem [shape: f32[8,3072], index: 9, kind: output, shape index: {0}]
  %s10 = inlined_call_operand.vmem [shape: f32[8,128], index: 10, kind: output, shape index: {1}]
  %11 = xla_tuple %s9, %s10
  %s12 = sld [smem:[#allocation0]]
  $region74: #{autoencoder_forward.1} parent=0
    _
  %s14 = ssub.s32 1, %s12
  %s15 = scalar_select 0, %s14, %s12
  $region1: #{autoencoder_forward.1} parent=0
    #allocation2 [shape = 'u8[1572864]{0}', space=vmem, size = 0x180000, scoped, tag = 'input window, operand 1, single buffered']
    #allocation3 [shape = 's32[1]{0}', space=sflag, size = 0x4, scoped, tag = 'scoped memory for autoencoder_forward.1']
    #allocation4 [shape = 'u8[512]{0}', space=vmem, size = 0x400, scoped, tag = 'input window, operand 2, single buffered']
    #allocation5 [shape = 's32[1]{0}', space=sflag, size = 0x4, scoped, tag = 'scoped memory for autoencoder_forward.1']
    #allocation6 [shape = 'u8[512]{0}', space=vmem, size = 0x400, scoped, tag = 'input window, operand 6, single buffered']
    #allocation7 [shape = 'u8[1572864]{0}', space=vmem, size = 0x180000, scoped, tag = 'input window, operand 7, single buffered']
    #allocation8 [shape = 's32[1]{0}', space=sflag, size = 0x4, scoped, tag = 'scoped memory for autoencoder_forward.1']
    #allocation9 [shape = 'u8[12288]{0}', space=vmem, size = 0x3000, scoped, tag = 'input window, operand 8, single buffered']
    %16 = vsyncpa [#allocation3], 0
    %17 = vsyncpa [#allocation5], 0
    %18 = vsyncpa [#allocation8], 0
    // Predicated region
    $region2: #{autoencoder_forward.1} parent=1 // pred_check
      _
    $region3: #{autoencoder_forward.1} parent=1 // pred_check_branch
      %20 = sbr.rel (0) target = $region5
    $region4: #{autoencoder_forward.1} parent=1 // pred_region
      _
    $region5: #{autoencoder_forward.1} parent=1 // pred_fallthru
      _
    // Predicated region
    $region6: #{autoencoder_forward.1} parent=1 // pred_check
      _
    $region7: #{autoencoder_forward.1} parent=1 // pred_check_branch
      %22 = sbr.rel (0) target = $region9
    $region8: #{autoencoder_forward.1} parent=1 // pred_region
      %24 = vsyncadd [#allocation3], 0
      %s25 = sshll.u32 %s1, 4
      %s26 = int_to_ptr.hbm [resolvable:$true] %s25
      %s27 = sshll.u32 [#allocation2], 4
      %s28 = int_to_ptr.vmem [resolvable:$true] %s27
      %33 = dma.hbm_to_vmem [thread:$0]  %s26, 49152, %s28, [#allocation3], 128, 128, 8
    $region9: #{autoencoder_forward.1} parent=1 // pred_fallthru
      _
    // Predicated region
    $region10: #{autoencoder_forward.1} parent=1 // pred_check
      _
    $region11: #{autoencoder_forward.1} parent=1 // pred_check_branch
      %35 = sbr.rel (0) target = $region13
    $region12: #{autoencoder_forward.1} parent=1 // pred_region
      %37 = vsyncadd [#allocation5], 0
      %s39 = sshll.u32 %s2, 4
      %s40 = int_to_ptr.hbm [resolvable:$true] %s39
      %s41 = sshll.u32 [#allocation4], 4
      %s42 = int_to_ptr.vmem [resolvable:$true] %s41
      %44 = dma.hbm_to_vmem [thread:$0]  %s40, 16, %s42, [#allocation5]
    $region13: #{autoencoder_forward.1} parent=1 // pred_fallthru
      _
    // Predicated region
    $region14: #{autoencoder_forward.1} parent=1 // pred_check
      _
    $region15: #{autoencoder_forward.1} parent=1 // pred_check_branch
      %46 = sbr.rel (0) target = $region17
    $region16: #{autoencoder_forward.1} parent=1 // pred_region
      _
    $region17: #{autoencoder_forward.1} parent=1 // pred_fallthru
      _
    // Predicated region
    $region18: #{autoencoder_forward.1} parent=1 // pred_check
      _
    $region19: #{autoencoder_forward.1} parent=1 // pred_check_branch
      %48 = sbr.rel (0) target = $region21
    $region20: #{autoencoder_forward.1} parent=1 // pred_region
      _
    $region21: #{autoencoder_forward.1} parent=1 // pred_fallthru
      _
    // Predicated region
    $region22: #{autoencoder_forward.1} parent=1 // pred_check
      _
    $region23: #{autoencoder_forward.1} parent=1 // pred_check_branch
      %50 = sbr.rel (0) target = $region25
    $region24: #{autoencoder_forward.1} parent=1 // pred_region
      _
    $region25: #{autoencoder_forward.1} parent=1 // pred_fallthru
      _
    // Predicated region
    $region26: #{autoencoder_forward.1} parent=1 // pred_check
      _
    $region27: #{autoencoder_forward.1} parent=1 // pred_check_branch
      %52 = sbr.rel (0) target = $region29
    $region28: #{autoencoder_forward.1} parent=1 // pred_region
      %54 = vsyncadd [#allocation5], 0
      %s56 = sshll.u32 %s6, 4
      %s57 = int_to_ptr.hbm [resolvable:$true] %s56
      %s58 = sshll.u32 [#allocation6], 4
      %s59 = int_to_ptr.vmem [resolvable:$true] %s58
      %61 = dma.hbm_to_vmem [thread:$0]  %s57, 16, %s59, [#allocation5]
    $region29: #{autoencoder_forward.1} parent=1 // pred_fallthru
      _
    // Predicated region
    $region30: #{autoencoder_forward.1} parent=1 // pred_check
      _
    $region31: #{autoencoder_forward.1} parent=1 // pred_check_branch
      %63 = sbr.rel (0) target = $region33
    $region32: #{autoencoder_forward.1} parent=1 // pred_region
      %65 = vsyncadd [#allocation8], 0
      %s66 = sshll.u32 %s7, 4
      %s67 = int_to_ptr.hbm [resolvable:$true] %s66
      %s68 = sshll.u32 [#allocation7], 4
      %s69 = int_to_ptr.vmem [resolvable:$true] %s68
      %74 = dma.hbm_to_vmem [thread:$0]  %s67, 49152, %s69, [#allocation8], 3072, 3072, 192
    $region33: #{autoencoder_forward.1} parent=1 // pred_fallthru
      _
    // Predicated region
    $region34: #{autoencoder_forward.1} parent=1 // pred_check
      _
    $region35: #{autoencoder_forward.1} parent=1 // pred_check_branch
      %76 = sbr.rel (0) target = $region37
    $region36: #{autoencoder_forward.1} parent=1 // pred_region
      %78 = vsyncadd [#allocation8], 0
      %s80 = sshll.u32 %s8, 4
      %s81 = int_to_ptr.hbm [resolvable:$true] %s80
      %s82 = sshll.u32 [#allocation9], 4
      %s83 = int_to_ptr.vmem [resolvable:$true] %s82
      %85 = dma.hbm_to_vmem [thread:$0]  %s81, 384, %s83, [#allocation8]
    $region37: #{autoencoder_forward.1} parent=1 // pred_fallthru
      _
    // Predicated region
    $region38: #{autoencoder_forward.1} parent=1 // pred_check
      _
    $region39: #{autoencoder_forward.1} parent=1 // pred_check_branch
      %87 = sbr.rel (0) target = $region41
    $region40: #{autoencoder_forward.1} parent=1 // pred_region
      %89 = dma.done [#allocation3], 49152
    $region41: #{autoencoder_forward.1} parent=1 // pred_fallthru
      _
    // Predicated region
    $region42: #{autoencoder_forward.1} parent=1 // pred_check
      _
    $region43: #{autoencoder_forward.1} parent=1 // pred_check_branch
      %91 = sbr.rel (0) target = $region45
    $region44: #{autoencoder_forward.1} parent=1 // pred_region
      %93 = dma.done [#allocation5], 16
    $region45: #{autoencoder_forward.1} parent=1 // pred_fallthru
      _
    // Predicated region
    $region46: #{autoencoder_forward.1} parent=1 // pred_check
      _
    $region47: #{autoencoder_forward.1} parent=1 // pred_check_branch
      %95 = sbr.rel (0) target = $region49
    $region48: #{autoencoder_forward.1} parent=1 // pred_region
      %97 = dma.done [#allocation5], 16
    $region49: #{autoencoder_forward.1} parent=1 // pred_fallthru
      _
    // Predicated region
    $region50: #{autoencoder_forward.1} parent=1 // pred_check
      _
    $region51: #{autoencoder_forward.1} parent=1 // pred_check_branch
      %99 = sbr.rel (0) target = $region53
    $region52: #{autoencoder_forward.1} parent=1 // pred_region
      %101 = dma.done [#allocation8], 49152
    $region53: #{autoencoder_forward.1} parent=1 // pred_fallthru
      _
    // Predicated region
    $region54: #{autoencoder_forward.1} parent=1 // pred_check
      _
    $region55: #{autoencoder_forward.1} parent=1 // pred_check_branch
      %103 = sbr.rel (0) target = $region57
    $region56: #{autoencoder_forward.1} parent=1 // pred_region
      %105 = dma.done [#allocation8], 384
    $region57: #{autoencoder_forward.1} parent=1 // pred_fallthru
      _
    %v106 = vld [vmem:[%s0] sm:$0xff]
    %v107 = vld [vmem:[%s0 + $0x8] sm:$0xff]
    %v108 = vld [vmem:[%s0 + $0x10] sm:$0xff]
    %v109 = vld [vmem:[%s0 + $0x18] sm:$0xff]
    %v110 = vld [vmem:[%s0 + $0x20] sm:$0xff]
    %v111 = vld [vmem:[%s0 + $0x28] sm:$0xff]
    %v112 = vld [vmem:[%s0 + $0x30] sm:$0xff]
    %v113 = vld [vmem:[%s0 + $0x38] sm:$0xff]
    %v114 = vld [vmem:[%s0 + $0x40] sm:$0xff]
    %v115 = vld [vmem:[%s0 + $0x48] sm:$0xff]
    %v116 = vld [vmem:[%s0 + $0x50] sm:$0xff]
    %v117 = vld [vmem:[%s0 + $0x58] sm:$0xff]
    %v118 = vld [vmem:[%s0 + $0x60] sm:$0xff]
    %v119 = vld [vmem:[%s0 + $0x68] sm:$0xff]
    %v120 = vld [vmem:[%s0 + $0x70] sm:$0xff]
    %v121 = vld [vmem:[%s0 + $0x78] sm:$0xff]
    %v122 = vld [vmem:[%s0 + $0x80] sm:$0xff]
    %v123 = vld [vmem:[%s0 + $0x88] sm:$0xff]
    %v124 = vld [vmem:[%s0 + $0x90] sm:$0xff]
    %v125 = vld [vmem:[%s0 + $0x98] sm:$0xff]
    %v126 = vld [vmem:[%s0 + $0xa0] sm:$0xff]
    %v127 = vld [vmem:[%s0 + $0xa8] sm:$0xff]
    %v128 = vld [vmem:[%s0 + $0xb0] sm:$0xff]
    %v129 = vld [vmem:[%s0 + $0xb8] sm:$0xff]
    %v130 = vld [vmem:[#allocation2] sm:$0xff]
    %v131 = vld [vmem:[#allocation2 + $0x8] sm:$0xff]
    %v132 = vld [vmem:[#allocation2 + $0x10] sm:$0xff]
    %v133 = vld [vmem:[#allocation2 + $0x18] sm:$0xff]
    %v134 = vld [vmem:[#allocation2 + $0x20] sm:$0xff]
    %v135 = vld [vmem:[#allocation2 + $0x28] sm:$0xff]
    %v136 = vld [vmem:[#allocation2 + $0x30] sm:$0xff]
    %v137 = vld [vmem:[#allocation2 + $0x38] sm:$0xff]
    %v138 = vld [vmem:[#allocation2 + $0x40] sm:$0xff]
    %v139 = vld [vmem:[#allocation2 + $0x48] sm:$0xff]
    %v140 = vld [vmem:[#allocation2 + $0x50] sm:$0xff]
    %v141 = vld [vmem:[#allocation2 + $0x58] sm:$0xff]
    %v142 = vld [vmem:[#allocation2 + $0x60] sm:$0xff]
    %v143 = vld [vmem:[#allocation2 + $0x68] sm:$0xff]
    %v144 = vld [vmem:[#allocation2 + $0x70] sm:$0xff]
    %v145 = vld [vmem:[#allocation2 + $0x78] sm:$0xff]
    %v146 = vld [vmem:[#allocation2 + $0x80] sm:$0xff]
    %v147 = vld [vmem:[#allocation2 + $0x88] sm:$0xff]
    %v148 = vld [vmem:[#allocation2 + $0x90] sm:$0xff]
    %v149 = vld [vmem:[#allocation2 + $0x98] sm:$0xff]
    %v150 = vld [vmem:[#allocation2 + $0xa0] sm:$0xff]
    %v151 = vld [vmem:[#allocation2 + $0xa8] sm:$0xff]
    %v152 = vld [vmem:[#allocation2 + $0xb0] sm:$0xff]
    %v153 = vld [vmem:[#allocation2 + $0xb8] sm:$0xff]
    %v154 = vld [vmem:[#allocation2 + $0xc0] sm:$0xff]
    %v155 = vld [vmem:[#allocation2 + $0xc8] sm:$0xff]
    %v156 = vld [vmem:[#allocation2 + $0xd0] sm:$0xff]
    %v157 = vld [vmem:[#allocation2 + $0xd8] sm:$0xff]
    %v158 = vld [vmem:[#allocation2 + $0xe0] sm:$0xff]
    %v159 = vld [vmem:[#allocation2 + $0xe8] sm:$0xff]
    %v160 = vld [vmem:[#allocation2 + $0xf0] sm:$0xff]
    %v161 = vld [vmem:[#allocation2 + $0xf8] sm:$0xff]
    %v162 = vld [vmem:[#allocation2 + $0x100] sm:$0xff]
    %v163 = vld [vmem:[#allocation2 + $0x108] sm:$0xff]
    %v164 = vld [vmem:[#allocation2 + $0x110] sm:$0xff]
    %v165 = vld [vmem:[#allocation2 + $0x118] sm:$0xff]
    %v166 = vld [vmem:[#allocation2 + $0x120] sm:$0xff]
    %v167 = vld [vmem:[#allocation2 + $0x128] sm:$0xff]
    %v168 = vld [vmem:[#allocation2 + $0x130] sm:$0xff]
    %v169 = vld [vmem:[#allocation2 + $0x138] sm:$0xff]
    %v170 = vld [vmem:[#allocation2 + $0x140] sm:$0xff]
    %v171 = vld [vmem:[#allocation2 + $0x148] sm:$0xff]
    %v172 = vld [vmem:[#allocation2 + $0x150] sm:$0xff]
    %v173 = vld [vmem:[#allocation2 + $0x158] sm:$0xff]
    %v174 = vld [vmem:[#allocation2 + $0x160] sm:$0xff]
    %v175 = vld [vmem:[#allocation2 + $0x168] sm:$0xff]
    %v176 = vld [vmem:[#allocation2 + $0x170] sm:$0xff]
    %v177 = vld [vmem:[#allocation2 + $0x178] sm:$0xff]
    %v178 = vld [vmem:[#allocation2 + $0x180] sm:$0xff]
    %v179 = vld [vmem:[#allocation2 + $0x188] sm:$0xff]
    %v180 = vld [vmem:[#allocation2 + $0x190] sm:$0xff]
    %v181 = vld [vmem:[#allocation2 + $0x198] sm:$0xff]
    %v182 = vld [vmem:[#allocation2 + $0x1a0] sm:$0xff]
    %v183 = vld [vmem:[#allocation2 + $0x1a8] sm:$0xff]
    %v184 = vld [vmem:[#allocation2 + $0x1b0] sm:$0xff]
    %v185 = vld [vmem:[#allocation2 + $0x1b8] sm:$0xff]
    %v186 = vld [vmem:[#allocation2 + $0x1c0] sm:$0xff]
    %v187 = vld [vmem:[#allocation2 + $0x1c8] sm:$0xff]
    %v188 = vld [vmem:[#allocation2 + $0x1d0] sm:$0xff]
    %v189 = vld [vmem:[#allocation2 + $0x1d8] sm:$0xff]
    %v190 = vld [vmem:[#allocation2 + $0x1e0] sm:$0xff]
    %v191 = vld [vmem:[#allocation2 + $0x1e8] sm:$0xff]
    %v192 = vld [vmem:[#allocation2 + $0x1f0] sm:$0xff]
    %v193 = vld [vmem:[#allocation2 + $0x1f8] sm:$0xff]
    %v194 = vld [vmem:[#allocation2 + $0x200] sm:$0xff]
    %v195 = vld [vmem:[#allocation2 + $0x208] sm:$0xff]
    %v196 = vld [vmem:[#allocation2 + $0x210] sm:$0xff]
    %v197 = vld [vmem:[#allocation2 + $0x218] sm:$0xff]
    %v198 = vld [vmem:[#allocation2 + $0x220] sm:$0xff]
    %v199 = vld [vmem:[#allocation2 + $0x228] sm:$0xff]
    %v200 = vld [vmem:[#allocation2 + $0x230] sm:$0xff]
    %v201 = vld [vmem:[#allocation2 + $0x238] sm:$0xff]
    %v202 = vld [vmem:[#allocation2 + $0x240] sm:$0xff]
    %v203 = vld [vmem:[#allocation2 + $0x248] sm:$0xff]
    %v204 = vld [vmem:[#allocation2 + $0x250] sm:$0xff]
    %v205 = vld [vmem:[#allocation2 + $0x258] sm:$0xff]
    %v206 = vld [vmem:[#allocation2 + $0x260] sm:$0xff]
    %v207 = vld [vmem:[#allocation2 + $0x268] sm:$0xff]
    %v208 = vld [vmem:[#allocation2 + $0x270] sm:$0xff]
    %v209 = vld [vmem:[#allocation2 + $0x278] sm:$0xff]
    %v210 = vld [vmem:[#allocation2 + $0x280] sm:$0xff]
    %v211 = vld [vmem:[#allocation2 + $0x288] sm:$0xff]
    %v212 = vld [vmem:[#allocation2 + $0x290] sm:$0xff]
    %v213 = vld [vmem:[#allocation2 + $0x298] sm:$0xff]
    %v214 = vld [vmem:[#allocation2 + $0x2a0] sm:$0xff]
    %v215 = vld [vmem:[#allocation2 + $0x2a8] sm:$0xff]
    %v216 = vld [vmem:[#allocation2 + $0x2b0] sm:$0xff]
    %v217 = vld [vmem:[#allocation2 + $0x2b8] sm:$0xff]
    %v218 = vld [vmem:[#allocation2 + $0x2c0] sm:$0xff]
    %v219 = vld [vmem:[#allocation2 + $0x2c8] sm:$0xff]
    %v220 = vld [vmem:[#allocation2 + $0x2d0] sm:$0xff]
    %v221 = vld [vmem:[#allocation2 + $0x2d8] sm:$0xff]
    %v222 = vld [vmem:[#allocation2 + $0x2e0] sm:$0xff]
    %v223 = vld [vmem:[#allocation2 + $0x2e8] sm:$0xff]
    %v224 = vld [vmem:[#allocation2 + $0x2f0] sm:$0xff]
    %v225 = vld [vmem:[#allocation2 + $0x2f8] sm:$0xff]
    %v226 = vld [vmem:[#allocation2 + $0x300] sm:$0xff]
    %v227 = vld [vmem:[#allocation2 + $0x308] sm:$0xff]
    %v228 = vld [vmem:[#allocation2 + $0x310] sm:$0xff]
    %v229 = vld [vmem:[#allocation2 + $0x318] sm:$0xff]
    %v230 = vld [vmem:[#allocation2 + $0x320] sm:$0xff]
    %v231 = vld [vmem:[#allocation2 + $0x328] sm:$0xff]
    %v232 = vld [vmem:[#allocation2 + $0x330] sm:$0xff]
    %v233 = vld [vmem:[#allocation2 + $0x338] sm:$0xff]
    %v234 = vld [vmem:[#allocation2 + $0x340] sm:$0xff]
    %v235 = vld [vmem:[#allocation2 + $0x348] sm:$0xff]
    %v236 = vld [vmem:[#allocation2 + $0x350] sm:$0xff]
    %v237 = vld [vmem:[#allocation2 + $0x358] sm:$0xff]
    %v238 = vld [vmem:[#allocation2 + $0x360] sm:$0xff]
    %v239 = vld [vmem:[#allocation2 + $0x368] sm:$0xff]
    %v240 = vld [vmem:[#allocation2 + $0x370] sm:$0xff]
    %v241 = vld [vmem:[#allocation2 + $0x378] sm:$0xff]
    %v242 = vld [vmem:[#allocation2 + $0x380] sm:$0xff]
    %v243 = vld [vmem:[#allocation2 + $0x388] sm:$0xff]
    %v244 = vld [vmem:[#allocation2 + $0x390] sm:$0xff]
    %v245 = vld [vmem:[#allocation2 + $0x398] sm:$0xff]
    %v246 = vld [vmem:[#allocation2 + $0x3a0] sm:$0xff]
    %v247 = vld [vmem:[#allocation2 + $0x3a8] sm:$0xff]
    %v248 = vld [vmem:[#allocation2 + $0x3b0] sm:$0xff]
    %v249 = vld [vmem:[#allocation2 + $0x3b8] sm:$0xff]
    %v250 = vld [vmem:[#allocation2 + $0x3c0] sm:$0xff]
    %v251 = vld [vmem:[#allocation2 + $0x3c8] sm:$0xff]
    %v252 = vld [vmem:[#allocation2 + $0x3d0] sm:$0xff]
    %v253 = vld [vmem:[#allocation2 + $0x3d8] sm:$0xff]
    %v254 = vld [vmem:[#allocation2 + $0x3e0] sm:$0xff]
    %v255 = vld [vmem:[#allocation2 + $0x3e8] sm:$0xff]
    %v256 = vld [vmem:[#allocation2 + $0x3f0] sm:$0xff]
    %v257 = vld [vmem:[#allocation2 + $0x3f8] sm:$0xff]
    %v258 = vld [vmem:[#allocation2 + $0x400] sm:$0xff]
    %v259 = vld [vmem:[#allocation2 + $0x408] sm:$0xff]
    %v260 = vld [vmem:[#allocation2 + $0x410] sm:$0xff]
    %v261 = vld [vmem:[#allocation2 + $0x418] sm:$0xff]
    %v262 = vld [vmem:[#allocation2 + $0x420] sm:$0xff]
    %v263 = vld [vmem:[#allocation2 + $0x428] sm:$0xff]
    %v264 = vld [vmem:[#allocation2 + $0x430] sm:$0xff]
    %v265 = vld [vmem:[#allocation2 + $0x438] sm:$0xff]
    %v266 = vld [vmem:[#allocation2 + $0x440] sm:$0xff]
    %v267 = vld [vmem:[#allocation2 + $0x448] sm:$0xff]
    %v268 = vld [vmem:[#allocation2 + $0x450] sm:$0xff]
    %v269 = vld [vmem:[#allocation2 + $0x458] sm:$0xff]
    %v270 = vld [vmem:[#allocation2 + $0x460] sm:$0xff]
    %v271 = vld [vmem:[#allocation2 + $0x468] sm:$0xff]
    %v272 = vld [vmem:[#allocation2 + $0x470] sm:$0xff]
    %v273 = vld [vmem:[#allocation2 + $0x478] sm:$0xff]
    %v274 = vld [vmem:[#allocation2 + $0x480] sm:$0xff]
    %v275 = vld [vmem:[#allocation2 + $0x488] sm:$0xff]
    %v276 = vld [vmem:[#allocation2 + $0x490] sm:$0xff]
    %v277 = vld [vmem:[#allocation2 + $0x498] sm:$0xff]
    %v278 = vld [vmem:[#allocation2 + $0x4a0] sm:$0xff]
    %v279 = vld [vmem:[#allocation2 + $0x4a8] sm:$0xff]
    %v280 = vld [vmem:[#allocation2 + $0x4b0] sm:$0xff]
    %v281 = vld [vmem:[#allocation2 + $0x4b8] sm:$0xff]
    %v282 = vld [vmem:[#allocation2 + $0x4c0] sm:$0xff]
    %v283 = vld [vmem:[#allocation2 + $0x4c8] sm:$0xff]
    %v284 = vld [vmem:[#allocation2 + $0x4d0] sm:$0xff]
    %v285 = vld [vmem:[#allocation2 + $0x4d8] sm:$0xff]
    %v286 = vld [vmem:[#allocation2 + $0x4e0] sm:$0xff]
    %v287 = vld [vmem:[#allocation2 + $0x4e8] sm:$0xff]
    %v288 = vld [vmem:[#allocation2 + $0x4f0] sm:$0xff]
    %v289 = vld [vmem:[#allocation2 + $0x4f8] sm:$0xff]
    %v290 = vld [vmem:[#allocation2 + $0x500] sm:$0xff]
    %v291 = vld [vmem:[#allocation2 + $0x508] sm:$0xff]
    %v292 = vld [vmem:[#allocation2 + $0x510] sm:$0xff]
    %v293 = vld [vmem:[#allocation2 + $0x518] sm:$0xff]
    %v294 = vld [vmem:[#allocation2 + $0x520] sm:$0xff]
    %v295 = vld [vmem:[#allocation2 + $0x528] sm:$0xff]
    %v296 = vld [vmem:[#allocation2 + $0x530] sm:$0xff]
    %v297 = vld [vmem:[#allocation2 + $0x538] sm:$0xff]
    %v298 = vld [vmem:[#allocation2 + $0x540] sm:$0xff]
    %v299 = vld [vmem:[#allocation2 + $0x548] sm:$0xff]
    %v300 = vld [vmem:[#allocation2 + $0x550] sm:$0xff]
    %v301 = vld [vmem:[#allocation2 + $0x558] sm:$0xff]
    %v302 = vld [vmem:[#allocation2 + $0x560] sm:$0xff]
    %v303 = vld [vmem:[#allocation2 + $0x568] sm:$0xff]
    %v304 = vld [vmem:[#allocation2 + $0x570] sm:$0xff]
    %v305 = vld [vmem:[#allocation2 + $0x578] sm:$0xff]
    %v306 = vld [vmem:[#allocation2 + $0x580] sm:$0xff]
    %v307 = vld [vmem:[#allocation2 + $0x588] sm:$0xff]
    %v308 = vld [vmem:[#allocation2 + $0x590] sm:$0xff]
    %v309 = vld [vmem:[#allocation2 + $0x598] sm:$0xff]
    %v310 = vld [vmem:[#allocation2 + $0x5a0] sm:$0xff]
    %v311 = vld [vmem:[#allocation2 + $0x5a8] sm:$0xff]
    %v312 = vld [vmem:[#allocation2 + $0x5b0] sm:$0xff]
    %v313 = vld [vmem:[#allocation2 + $0x5b8] sm:$0xff]
    %v314 = vld [vmem:[#allocation2 + $0x5c0] sm:$0xff]
    %v315 = vld [vmem:[#allocation2 + $0x5c8] sm:$0xff]
    %v316 = vld [vmem:[#allocation2 + $0x5d0] sm:$0xff]
    %v317 = vld [vmem:[#allocation2 + $0x5d8] sm:$0xff]
    %v318 = vld [vmem:[#allocation2 + $0x5e0] sm:$0xff]
    %v319 = vld [vmem:[#allocation2 + $0x5e8] sm:$0xff]
    %v320 = vld [vmem:[#allocation2 + $0x5f0] sm:$0xff]
    %v321 = vld [vmem:[#allocation2 + $0x5f8] sm:$0xff]
    %v322 = vld [vmem:[#allocation2 + $0x600] sm:$0xff]
    %v323 = vld [vmem:[#allocation2 + $0x608] sm:$0xff]
    %v324 = vld [vmem:[#allocation2 + $0x610] sm:$0xff]
    %v325 = vld [vmem:[#allocation2 + $0x618] sm:$0xff]
    %v326 = vld [vmem:[#allocation2 + $0x620] sm:$0xff]
    %v327 = vld [vmem:[#allocation2 + $0x628] sm:$0xff]
    %v328 = vld [vmem:[#allocation2 + $0x630] sm:$0xff]
    %v329 = vld [vmem:[#allocation2 + $0x638] sm:$0xff]
    %v330 = vld [vmem:[#allocation2 + $0x640] sm:$0xff]
    %v331 = vld [vmem:[#allocation2 + $0x648] sm:$0xff]
    %v332 = vld [vmem:[#allocation2 + $0x650] sm:$0xff]
    %v333 = vld [vmem:[#allocation2 + $0x658] sm:$0xff]
    %v334 = vld [vmem:[#allocation2 + $0x660] sm:$0xff]
    %v335 = vld [vmem:[#allocation2 + $0x668] sm:$0xff]
    %v336 = vld [vmem:[#allocation2 + $0x670] sm:$0xff]
    %v337 = vld [vmem:[#allocation2 + $0x678] sm:$0xff]
    %v338 = vld [vmem:[#allocation2 + $0x680] sm:$0xff]
    %v339 = vld [vmem:[#allocation2 + $0x688] sm:$0xff]
    %v340 = vld [vmem:[#allocation2 + $0x690] sm:$0xff]
    %v341 = vld [vmem:[#allocation2 + $0x698] sm:$0xff]
    %v342 = vld [vmem:[#allocation2 + $0x6a0] sm:$0xff]
    %v343 = vld [vmem:[#allocation2 + $0x6a8] sm:$0xff]
    %v344 = vld [vmem:[#allocation2 + $0x6b0] sm:$0xff]
    %v345 = vld [vmem:[#allocation2 + $0x6b8] sm:$0xff]
    %v346 = vld [vmem:[#allocation2 + $0x6c0] sm:$0xff]
    %v347 = vld [vmem:[#allocation2 + $0x6c8] sm:$0xff]
    %v348 = vld [vmem:[#allocation2 + $0x6d0] sm:$0xff]
    %v349 = vld [vmem:[#allocation2 + $0x6d8] sm:$0xff]
    %v350 = vld [vmem:[#allocation2 + $0x6e0] sm:$0xff]
    %v351 = vld [vmem:[#allocation2 + $0x6e8] sm:$0xff]
    %v352 = vld [vmem:[#allocation2 + $0x6f0] sm:$0xff]
    %v353 = vld [vmem:[#allocation2 + $0x6f8] sm:$0xff]
    %v354 = vld [vmem:[#allocation2 + $0x700] sm:$0xff]
    %v355 = vld [vmem:[#allocation2 + $0x708] sm:$0xff]
    %v356 = vld [vmem:[#allocation2 + $0x710] sm:$0xff]
    %v357 = vld [vmem:[#allocation2 + $0x718] sm:$0xff]
    %v358 = vld [vmem:[#allocation2 + $0x720] sm:$0xff]
    %v359 = vld [vmem:[#allocation2 + $0x728] sm:$0xff]
    %v360 = vld [vmem:[#allocation2 + $0x730] sm:$0xff]
    %v361 = vld [vmem:[#allocation2 + $0x738] sm:$0xff]
    %v362 = vld [vmem:[#allocation2 + $0x740] sm:$0xff]
    %v363 = vld [vmem:[#allocation2 + $0x748] sm:$0xff]
    %v364 = vld [vmem:[#allocation2 + $0x750] sm:$0xff]
    %v365 = vld [vmem:[#allocation2 + $0x758] sm:$0xff]
    %v366 = vld [vmem:[#allocation2 + $0x760] sm:$0xff]
    %v367 = vld [vmem:[#allocation2 + $0x768] sm:$0xff]
    %v368 = vld [vmem:[#allocation2 + $0x770] sm:$0xff]
    %v369 = vld [vmem:[#allocation2 + $0x778] sm:$0xff]
    %v370 = vld [vmem:[#allocation2 + $0x780] sm:$0xff]
    %v371 = vld [vmem:[#allocation2 + $0x788] sm:$0xff]
    %v372 = vld [vmem:[#allocation2 + $0x790] sm:$0xff]
    %v373 = vld [vmem:[#allocation2 + $0x798] sm:$0xff]
    %v374 = vld [vmem:[#allocation2 + $0x7a0] sm:$0xff]
    %v375 = vld [vmem:[#allocation2 + $0x7a8] sm:$0xff]
    %v376 = vld [vmem:[#allocation2 + $0x7b0] sm:$0xff]
    %v377 = vld [vmem:[#allocation2 + $0x7b8] sm:$0xff]
    %v378 = vld [vmem:[#allocation2 + $0x7c0] sm:$0xff]
    %v379 = vld [vmem:[#allocation2 + $0x7c8] sm:$0xff]
    %v380 = vld [vmem:[#allocation2 + $0x7d0] sm:$0xff]
    %v381 = vld [vmem:[#allocation2 + $0x7d8] sm:$0xff]
    %v382 = vld [vmem:[#allocation2 + $0x7e0] sm:$0xff]
    %v383 = vld [vmem:[#allocation2 + $0x7e8] sm:$0xff]
    %v384 = vld [vmem:[#allocation2 + $0x7f0] sm:$0xff]
    %v385 = vld [vmem:[#allocation2 + $0x7f8] sm:$0xff]
    %v386 = vld [vmem:[#allocation2 + $0x800] sm:$0xff]
    %v387 = vld [vmem:[#allocation2 + $0x808] sm:$0xff]
    %v388 = vld [vmem:[#allocation2 + $0x810] sm:$0xff]
    %v389 = vld [vmem:[#allocation2 + $0x818] sm:$0xff]
    %v390 = vld [vmem:[#allocation2 + $0x820] sm:$0xff]
    %v391 = vld [vmem:[#allocation2 + $0x828] sm:$0xff]
    %v392 = vld [vmem:[#allocation2 + $0x830] sm:$0xff]
    %v393 = vld [vmem:[#allocation2 + $0x838] sm:$0xff]
    %v394 = vld [vmem:[#allocation2 + $0x840] sm:$0xff]
    %v395 = vld [vmem:[#allocation2 + $0x848] sm:$0xff]
    %v396 = vld [vmem:[#allocation2 + $0x850] sm:$0xff]
    %v397 = vld [vmem:[#allocation2 + $0x858] sm:$0xff]
    %v398 = vld [vmem:[#allocation2 + $0x860] sm:$0xff]
    %v399 = vld [vmem:[#allocation2 + $0x868] sm:$0xff]
    %v400 = vld [vmem:[#allocation2 + $0x870] sm:$0xff]
    %v401 = vld [vmem:[#allocation2 + $0x878] sm:$0xff]
    %v402 = vld [vmem:[#allocation2 + $0x880] sm:$0xff]
    %v403 = vld [vmem:[#allocation2 + $0x888] sm:$0xff]
    %v404 = vld [vmem:[#allocation2 + $0x890] sm:$0xff]
    %v405 = vld [vmem:[#allocation2 + $0x898] sm:$0xff]
    %v406 = vld [vmem:[#allocation2 + $0x8a0] sm:$0xff]
    %v407 = vld [vmem:[#allocation2 + $0x8a8] sm:$0xff]
    %v408 = vld [vmem:[#allocation2 + $0x8b0] sm:$0xff]
    %v409 = vld [vmem:[#allocation2 + $0x8b8] sm:$0xff]
    %v410 = vld [vmem:[#allocation2 + $0x8c0] sm:$0xff]
    %v411 = vld [vmem:[#allocation2 + $0x8c8] sm:$0xff]
    %v412 = vld [vmem:[#allocation2 + $0x8d0] sm:$0xff]
    %v413 = vld [vmem:[#allocation2 + $0x8d8] sm:$0xff]
    %v414 = vld [vmem:[#allocation2 + $0x8e0] sm:$0xff]
    %v415 = vld [vmem:[#allocation2 + $0x8e8] sm:$0xff]
    %v416 = vld [vmem:[#allocation2 + $0x8f0] sm:$0xff]
    %v417 = vld [vmem:[#allocation2 + $0x8f8] sm:$0xff]
    %v418 = vld [vmem:[#allocation2 + $0x900] sm:$0xff]
    %v419 = vld [vmem:[#allocation2 + $0x908] sm:$0xff]
    %v420 = vld [vmem:[#allocation2 + $0x910] sm:$0xff]
    %v421 = vld [vmem:[#allocation2 + $0x918] sm:$0xff]
    %v422 = vld [vmem:[#allocation2 + $0x920] sm:$0xff]
    %v423 = vld [vmem:[#allocation2 + $0x928] sm:$0xff]
    %v424 = vld [vmem:[#allocation2 + $0x930] sm:$0xff]
    %v425 = vld [vmem:[#allocation2 + $0x938] sm:$0xff]
    %v426 = vld [vmem:[#allocation2 + $0x940] sm:$0xff]
    %v427 = vld [vmem:[#allocation2 + $0x948] sm:$0xff]
    %v428 = vld [vmem:[#allocation2 + $0x950] sm:$0xff]
    %v429 = vld [vmem:[#allocation2 + $0x958] sm:$0xff]
    %v430 = vld [vmem:[#allocation2 + $0x960] sm:$0xff]
    %v431 = vld [vmem:[#allocation2 + $0x968] sm:$0xff]
    %v432 = vld [vmem:[#allocation2 + $0x970] sm:$0xff]
    %v433 = vld [vmem:[#allocation2 + $0x978] sm:$0xff]
    %v434 = vld [vmem:[#allocation2 + $0x980] sm:$0xff]
    %v435 = vld [vmem:[#allocation2 + $0x988] sm:$0xff]
    %v436 = vld [vmem:[#allocation2 + $0x990] sm:$0xff]
    %v437 = vld [vmem:[#allocation2 + $0x998] sm:$0xff]
    %v438 = vld [vmem:[#allocation2 + $0x9a0] sm:$0xff]
    %v439 = vld [vmem:[#allocation2 + $0x9a8] sm:$0xff]
    %v440 = vld [vmem:[#allocation2 + $0x9b0] sm:$0xff]
    %v441 = vld [vmem:[#allocation2 + $0x9b8] sm:$0xff]
    %v442 = vld [vmem:[#allocation2 + $0x9c0] sm:$0xff]
    %v443 = vld [vmem:[#allocation2 + $0x9c8] sm:$0xff]
    %v444 = vld [vmem:[#allocation2 + $0x9d0] sm:$0xff]
    %v445 = vld [vmem:[#allocation2 + $0x9d8] sm:$0xff]
    %v446 = vld [vmem:[#allocation2 + $0x9e0] sm:$0xff]
    %v447 = vld [vmem:[#allocation2 + $0x9e8] sm:$0xff]
    %v448 = vld [vmem:[#allocation2 + $0x9f0] sm:$0xff]
    %v449 = vld [vmem:[#allocation2 + $0x9f8] sm:$0xff]
    %v450 = vld [vmem:[#allocation2 + $0xa00] sm:$0xff]
    %v451 = vld [vmem:[#allocation2 + $0xa08] sm:$0xff]
    %v452 = vld [vmem:[#allocation2 + $0xa10] sm:$0xff]
    %v453 = vld [vmem:[#allocation2 + $0xa18] sm:$0xff]
    %v454 = vld [vmem:[#allocation2 + $0xa20] sm:$0xff]
    %v455 = vld [vmem:[#allocation2 + $0xa28] sm:$0xff]
    %v456 = vld [vmem:[#allocation2 + $0xa30] sm:$0xff]
    %v457 = vld [vmem:[#allocation2 + $0xa38] sm:$0xff]
    %v458 = vld [vmem:[#allocation2 + $0xa40] sm:$0xff]
    %v459 = vld [vmem:[#allocation2 + $0xa48] sm:$0xff]
    %v460 = vld [vmem:[#allocation2 + $0xa50] sm:$0xff]
    %v461 = vld [vmem:[#allocation2 + $0xa58] sm:$0xff]
    %v462 = vld [vmem:[#allocation2 + $0xa60] sm:$0xff]
    %v463 = vld [vmem:[#allocation2 + $0xa68] sm:$0xff]
    %v464 = vld [vmem:[#allocation2 + $0xa70] sm:$0xff]
    %v465 = vld [vmem:[#allocation2 + $0xa78] sm:$0xff]
    %v466 = vld [vmem:[#allocation2 + $0xa80] sm:$0xff]
    %v467 = vld [vmem:[#allocation2 + $0xa88] sm:$0xff]
    %v468 = vld [vmem:[#allocation2 + $0xa90] sm:$0xff]
    %v469 = vld [vmem:[#allocation2 + $0xa98] sm:$0xff]
    %v470 = vld [vmem:[#allocation2 + $0xaa0] sm:$0xff]
    %v471 = vld [vmem:[#allocation2 + $0xaa8] sm:$0xff]
    %v472 = vld [vmem:[#allocation2 + $0xab0] sm:$0xff]
    %v473 = vld [vmem:[#allocation2 + $0xab8] sm:$0xff]
    %v474 = vld [vmem:[#allocation2 + $0xac0] sm:$0xff]
    %v475 = vld [vmem:[#allocation2 + $0xac8] sm:$0xff]
    %v476 = vld [vmem:[#allocation2 + $0xad0] sm:$0xff]
    %v477 = vld [vmem:[#allocation2 + $0xad8] sm:$0xff]
    %v478 = vld [vmem:[#allocation2 + $0xae0] sm:$0xff]
    %v479 = vld [vmem:[#allocation2 + $0xae8] sm:$0xff]
    %v480 = vld [vmem:[#allocation2 + $0xaf0] sm:$0xff]
    %v481 = vld [vmem:[#allocation2 + $0xaf8] sm:$0xff]
    %v482 = vld [vmem:[#allocation2 + $0xb00] sm:$0xff]
    %v483 = vld [vmem:[#allocation2 + $0xb08] sm:$0xff]
    %v484 = vld [vmem:[#allocation2 + $0xb10] sm:$0xff]
    %v485 = vld [vmem:[#allocation2 + $0xb18] sm:$0xff]
    %v486 = vld [vmem:[#allocation2 + $0xb20] sm:$0xff]
    %v487 = vld [vmem:[#allocation2 + $0xb28] sm:$0xff]
    %v488 = vld [vmem:[#allocation2 + $0xb30] sm:$0xff]
    %v489 = vld [vmem:[#allocation2 + $0xb38] sm:$0xff]
    %v490 = vld [vmem:[#allocation2 + $0xb40] sm:$0xff]
    %v491 = vld [vmem:[#allocation2 + $0xb48] sm:$0xff]
    %v492 = vld [vmem:[#allocation2 + $0xb50] sm:$0xff]
    %v493 = vld [vmem:[#allocation2 + $0xb58] sm:$0xff]
    %v494 = vld [vmem:[#allocation2 + $0xb60] sm:$0xff]
    %v495 = vld [vmem:[#allocation2 + $0xb68] sm:$0xff]
    %v496 = vld [vmem:[#allocation2 + $0xb70] sm:$0xff]
    %v497 = vld [vmem:[#allocation2 + $0xb78] sm:$0xff]
    %v498 = vld [vmem:[#allocation2 + $0xb80] sm:$0xff]
    %v499 = vld [vmem:[#allocation2 + $0xb88] sm:$0xff]
    %v500 = vld [vmem:[#allocation2 + $0xb90] sm:$0xff]
    %v501 = vld [vmem:[#allocation2 + $0xb98] sm:$0xff]
    %v502 = vld [vmem:[#allocation2 + $0xba0] sm:$0xff]
    %v503 = vld [vmem:[#allocation2 + $0xba8] sm:$0xff]
    %v504 = vld [vmem:[#allocation2 + $0xbb0] sm:$0xff]
    %v505 = vld [vmem:[#allocation2 + $0xbb8] sm:$0xff]
    %v506 = vld [vmem:[#allocation2 + $0xbc0] sm:$0xff]
    %v507 = vld [vmem:[#allocation2 + $0xbc8] sm:$0xff]
    %v508 = vld [vmem:[#allocation2 + $0xbd0] sm:$0xff]
    %v509 = vld [vmem:[#allocation2 + $0xbd8] sm:$0xff]
    %v510 = vld [vmem:[#allocation2 + $0xbe0] sm:$0xff]
    %v511 = vld [vmem:[#allocation2 + $0xbe8] sm:$0xff]
    %v512 = vld [vmem:[#allocation2 + $0xbf0] sm:$0xff]
    %v513 = vld [vmem:[#allocation2 + $0xbf8] sm:$0xff]
    %v514 = vld [vmem:[#allocation4] sm:$0x1]
    %v516 = vperm.slane %v514, 0
    %518 = vmatpush.msra.mxu0 %v145
    %519 = vmatpush.msra.mxu0 %v144
    %520 = vmatpush.msra.mxu0 %v143
    %521 = vmatpush.msra.mxu0 %v142
    %522 = vmatpush.msra.mxu0 %v141
    %523 = vmatpush.msra.mxu0 %v140
    %524 = vmatpush.msra.mxu0 %v139
    %525 = vmatpush.msra.mxu0 %v138
    %526 = vmatpush.msra.mxu0 %v137
    %527 = vmatpush.msra.mxu0 %v136
    %528 = vmatpush.msra.mxu0 %v135
    %529 = vmatpush.msra.mxu0 %v134
    %530 = vmatpush.msra.mxu0 %v133
    %531 = vmatpush.msra.mxu0 %v132
    %532 = vmatpush.msra.mxu0 %v131
    %533 = vmatpush.msra.mxu0 %v130
    %534 = vmatmul.f32.gmra.mxu0 %v106
    %v535 = vpop.f32.mrf.mxu0
    %v536 = vadd.f32 %v516, %v535
    %537 = vdwg.mxu0
    %538 = vmatpush.msra.mxu0 %v161
    %539 = vmatpush.msra.mxu0 %v160
    %540 = vmatpush.msra.mxu0 %v159
    %541 = vmatpush.msra.mxu0 %v158
    %542 = vmatpush.msra.mxu0 %v157
    %543 = vmatpush.msra.mxu0 %v156
    %544 = vmatpush.msra.mxu0 %v155
    %545 = vmatpush.msra.mxu0 %v154
    %546 = vmatpush.msra.mxu0 %v153
    %547 = vmatpush.msra.mxu0 %v152
    %548 = vmatpush.msra.mxu0 %v151
    %549 = vmatpush.msra.mxu0 %v150
    %550 = vmatpush.msra.mxu0 %v149
    %551 = vmatpush.msra.mxu0 %v148
    %552 = vmatpush.msra.mxu0 %v147
    %553 = vmatpush.msra.mxu0 %v146
    %554 = vmatmul.f32.gmra.mxu0 %v107
    %v555 = vpop.f32.mrf.mxu0
    %v556 = vadd.f32 %v536, %v555
    %557 = vdwg.mxu0
    %558 = vmatpush.msra.mxu0 %v177
    %559 = vmatpush.msra.mxu0 %v176
    %560 = vmatpush.msra.mxu0 %v175
    %561 = vmatpush.msra.mxu0 %v174
    %562 = vmatpush.msra.mxu0 %v173
    %563 = vmatpush.msra.mxu0 %v172
    %564 = vmatpush.msra.mxu0 %v171
    %565 = vmatpush.msra.mxu0 %v170
    %566 = vmatpush.msra.mxu0 %v169
    %567 = vmatpush.msra.mxu0 %v168
    %568 = vmatpush.msra.mxu0 %v167
    %569 = vmatpush.msra.mxu0 %v166
    %570 = vmatpush.msra.mxu0 %v165
    %571 = vmatpush.msra.mxu0 %v164
    %572 = vmatpush.msra.mxu0 %v163
    %573 = vmatpush.msra.mxu0 %v162
    %574 = vmatmul.f32.gmra.mxu0 %v108
    %v575 = vpop.f32.mrf.mxu0
    %v576 = vadd.f32 %v556, %v575
    %577 = vdwg.mxu0
    %578 = vmatpush.msra.mxu0 %v193
    %579 = vmatpush.msra.mxu0 %v192
    %580 = vmatpush.msra.mxu0 %v191
    %581 = vmatpush.msra.mxu0 %v190
    %582 = vmatpush.msra.mxu0 %v189
    %583 = vmatpush.msra.mxu0 %v188
    %584 = vmatpush.msra.mxu0 %v187
    %585 = vmatpush.msra.mxu0 %v186
    %586 = vmatpush.msra.mxu0 %v185
    %587 = vmatpush.msra.mxu0 %v184
    %588 = vmatpush.msra.mxu0 %v183
    %589 = vmatpush.msra.mxu0 %v182
    %590 = vmatpush.msra.mxu0 %v181
    %591 = vmatpush.msra.mxu0 %v180
    %592 = vmatpush.msra.mxu0 %v179
    %593 = vmatpush.msra.mxu0 %v178
    %594 = vmatmul.f32.gmra.mxu0 %v109
    %v595 = vpop.f32.mrf.mxu0
    %v596 = vadd.f32 %v576, %v595
    %597 = vdwg.mxu0
    %598 = vmatpush.msra.mxu0 %v209
    %599 = vmatpush.msra.mxu0 %v208
    %600 = vmatpush.msra.mxu0 %v207
    %601 = vmatpush.msra.mxu0 %v206
    %602 = vmatpush.msra.mxu0 %v205
    %603 = vmatpush.msra.mxu0 %v204
    %604 = vmatpush.msra.mxu0 %v203
    %605 = vmatpush.msra.mxu0 %v202
    %606 = vmatpush.msra.mxu0 %v201
    %607 = vmatpush.msra.mxu0 %v200
    %608 = vmatpush.msra.mxu0 %v199
    %609 = vmatpush.msra.mxu0 %v198
    %610 = vmatpush.msra.mxu0 %v197
    %611 = vmatpush.msra.mxu0 %v196
    %612 = vmatpush.msra.mxu0 %v195
    %613 = vmatpush.msra.mxu0 %v194
    %614 = vmatmul.f32.gmra.mxu0 %v110
    %v615 = vpop.f32.mrf.mxu0
    %v616 = vadd.f32 %v596, %v615
    %617 = vdwg.mxu0
    %618 = vmatpush.msra.mxu0 %v225
    %619 = vmatpush.msra.mxu0 %v224
    %620 = vmatpush.msra.mxu0 %v223
    %621 = vmatpush.msra.mxu0 %v222
    %622 = vmatpush.msra.mxu0 %v221
    %623 = vmatpush.msra.mxu0 %v220
    %624 = vmatpush.msra.mxu0 %v219
    %625 = vmatpush.msra.mxu0 %v218
    %626 = vmatpush.msra.mxu0 %v217
    %627 = vmatpush.msra.mxu0 %v216
    %628 = vmatpush.msra.mxu0 %v215
    %629 = vmatpush.msra.mxu0 %v214
    %630 = vmatpush.msra.mxu0 %v213
    %631 = vmatpush.msra.mxu0 %v212
    %632 = vmatpush.msra.mxu0 %v211
    %633 = vmatpush.msra.mxu0 %v210
    %634 = vmatmul.f32.gmra.mxu0 %v111
    %v635 = vpop.f32.mrf.mxu0
    %v636 = vadd.f32 %v616, %v635
    %637 = vdwg.mxu0
    %638 = vmatpush.msra.mxu0 %v241
    %639 = vmatpush.msra.mxu0 %v240
    %640 = vmatpush.msra.mxu0 %v239
    %641 = vmatpush.msra.mxu0 %v238
    %642 = vmatpush.msra.mxu0 %v237
    %643 = vmatpush.msra.mxu0 %v236
    %644 = vmatpush.msra.mxu0 %v235
    %645 = vmatpush.msra.mxu0 %v234
    %646 = vmatpush.msra.mxu0 %v233
    %647 = vmatpush.msra.mxu0 %v232
    %648 = vmatpush.msra.mxu0 %v231
    %649 = vmatpush.msra.mxu0 %v230
    %650 = vmatpush.msra.mxu0 %v229
    %651 = vmatpush.msra.mxu0 %v228
    %652 = vmatpush.msra.mxu0 %v227
    %653 = vmatpush.msra.mxu0 %v226
    %654 = vmatmul.f32.gmra.mxu0 %v112
    %v655 = vpop.f32.mrf.mxu0
    %v656 = vadd.f32 %v636, %v655
    %657 = vdwg.mxu0
    %658 = vmatpush.msra.mxu0 %v257
    %659 = vmatpush.msra.mxu0 %v256
    %660 = vmatpush.msra.mxu0 %v255
    %661 = vmatpush.msra.mxu0 %v254
    %662 = vmatpush.msra.mxu0 %v253
    %663 = vmatpush.msra.mxu0 %v252
    %664 = vmatpush.msra.mxu0 %v251
    %665 = vmatpush.msra.mxu0 %v250
    %666 = vmatpush.msra.mxu0 %v249
    %667 = vmatpush.msra.mxu0 %v248
    %668 = vmatpush.msra.mxu0 %v247
    %669 = vmatpush.msra.mxu0 %v246
    %670 = vmatpush.msra.mxu0 %v245
    %671 = vmatpush.msra.mxu0 %v244
    %672 = vmatpush.msra.mxu0 %v243
    %673 = vmatpush.msra.mxu0 %v242
    %674 = vmatmul.f32.gmra.mxu0 %v113
    %v675 = vpop.f32.mrf.mxu0
    %v676 = vadd.f32 %v656, %v675
    %677 = vdwg.mxu0
    %678 = vmatpush.msra.mxu0 %v273
    %679 = vmatpush.msra.mxu0 %v272
    %680 = vmatpush.msra.mxu0 %v271
    %681 = vmatpush.msra.mxu0 %v270
    %682 = vmatpush.msra.mxu0 %v269
    %683 = vmatpush.msra.mxu0 %v268
    %684 = vmatpush.msra.mxu0 %v267
    %685 = vmatpush.msra.mxu0 %v266
    %686 = vmatpush.msra.mxu0 %v265
    %687 = vmatpush.msra.mxu0 %v264
    %688 = vmatpush.msra.mxu0 %v263
    %689 = vmatpush.msra.mxu0 %v262
    %690 = vmatpush.msra.mxu0 %v261
    %691 = vmatpush.msra.mxu0 %v260
    %692 = vmatpush.msra.mxu0 %v259
    %693 = vmatpush.msra.mxu0 %v258
    %694 = vmatmul.f32.gmra.mxu0 %v114
    %v695 = vpop.f32.mrf.mxu0
    %v696 = vadd.f32 %v676, %v695
    %697 = vdwg.mxu0
    %698 = vmatpush.msra.mxu0 %v289
    %699 = vmatpush.msra.mxu0 %v288
    %700 = vmatpush.msra.mxu0 %v287
    %701 = vmatpush.msra.mxu0 %v286
    %702 = vmatpush.msra.mxu0 %v285
    %703 = vmatpush.msra.mxu0 %v284
    %704 = vmatpush.msra.mxu0 %v283
    %705 = vmatpush.msra.mxu0 %v282
    %706 = vmatpush.msra.mxu0 %v281
    %707 = vmatpush.msra.mxu0 %v280
    %708 = vmatpush.msra.mxu0 %v279
    %709 = vmatpush.msra.mxu0 %v278
    %710 = vmatpush.msra.mxu0 %v277
    %711 = vmatpush.msra.mxu0 %v276
    %712 = vmatpush.msra.mxu0 %v275
    %713 = vmatpush.msra.mxu0 %v274
    %714 = vmatmul.f32.gmra.mxu0 %v115
    %v715 = vpop.f32.mrf.mxu0
    %v716 = vadd.f32 %v696, %v715
    %717 = vdwg.mxu0
    %718 = vmatpush.msra.mxu0 %v305
    %719 = vmatpush.msra.mxu0 %v304
    %720 = vmatpush.msra.mxu0 %v303
    %721 = vmatpush.msra.mxu0 %v302
    %722 = vmatpush.msra.mxu0 %v301
    %723 = vmatpush.msra.mxu0 %v300
    %724 = vmatpush.msra.mxu0 %v299
    %725 = vmatpush.msra.mxu0 %v298
    %726 = vmatpush.msra.mxu0 %v297
    %727 = vmatpush.msra.mxu0 %v296
    %728 = vmatpush.msra.mxu0 %v295
    %729 = vmatpush.msra.mxu0 %v294
    %730 = vmatpush.msra.mxu0 %v293
    %731 = vmatpush.msra.mxu0 %v292
    %732 = vmatpush.msra.mxu0 %v291
    %733 = vmatpush.msra.mxu0 %v290
    %734 = vmatmul.f32.gmra.mxu0 %v116
    %v735 = vpop.f32.mrf.mxu0
    %v736 = vadd.f32 %v716, %v735
    %737 = vdwg.mxu0
    %738 = vmatpush.msra.mxu0 %v321
    %739 = vmatpush.msra.mxu0 %v320
    %740 = vmatpush.msra.mxu0 %v319
    %741 = vmatpush.msra.mxu0 %v318
    %742 = vmatpush.msra.mxu0 %v317
    %743 = vmatpush.msra.mxu0 %v316
    %744 = vmatpush.msra.mxu0 %v315
    %745 = vmatpush.msra.mxu0 %v314
    %746 = vmatpush.msra.mxu0 %v313
    %747 = vmatpush.msra.mxu0 %v312
    %748 = vmatpush.msra.mxu0 %v311
    %749 = vmatpush.msra.mxu0 %v310
    %750 = vmatpush.msra.mxu0 %v309
    %751 = vmatpush.msra.mxu0 %v308
    %752 = vmatpush.msra.mxu0 %v307
    %753 = vmatpush.msra.mxu0 %v306
    %754 = vmatmul.f32.gmra.mxu0 %v117
    %v755 = vpop.f32.mrf.mxu0
    %v756 = vadd.f32 %v736, %v755
    %757 = vdwg.mxu0
    %758 = vmatpush.msra.mxu0 %v337
    %759 = vmatpush.msra.mxu0 %v336
    %760 = vmatpush.msra.mxu0 %v335
    %761 = vmatpush.msra.mxu0 %v334
    %762 = vmatpush.msra.mxu0 %v333
    %763 = vmatpush.msra.mxu0 %v332
    %764 = vmatpush.msra.mxu0 %v331
    %765 = vmatpush.msra.mxu0 %v330
    %766 = vmatpush.msra.mxu0 %v329
    %767 = vmatpush.msra.mxu0 %v328
    %768 = vmatpush.msra.mxu0 %v327
    %769 = vmatpush.msra.mxu0 %v326
    %770 = vmatpush.msra.mxu0 %v325
    %771 = vmatpush.msra.mxu0 %v324
    %772 = vmatpush.msra.mxu0 %v323
    %773 = vmatpush.msra.mxu0 %v322
    %774 = vmatmul.f32.gmra.mxu0 %v118
    %v775 = vpop.f32.mrf.mxu0
    %v776 = vadd.f32 %v756, %v775
    %777 = vdwg.mxu0
    %778 = vmatpush.msra.mxu0 %v353
    %779 = vmatpush.msra.mxu0 %v352
    %780 = vmatpush.msra.mxu0 %v351
    %781 = vmatpush.msra.mxu0 %v350
    %782 = vmatpush.msra.mxu0 %v349
    %783 = vmatpush.msra.mxu0 %v348
    %784 = vmatpush.msra.mxu0 %v347
    %785 = vmatpush.msra.mxu0 %v346
    %786 = vmatpush.msra.mxu0 %v345
    %787 = vmatpush.msra.mxu0 %v344
    %788 = vmatpush.msra.mxu0 %v343
    %789 = vmatpush.msra.mxu0 %v342
    %790 = vmatpush.msra.mxu0 %v341
    %791 = vmatpush.msra.mxu0 %v340
    %792 = vmatpush.msra.mxu0 %v339
    %793 = vmatpush.msra.mxu0 %v338
    %794 = vmatmul.f32.gmra.mxu0 %v119
    %v795 = vpop.f32.mrf.mxu0
    %v796 = vadd.f32 %v776, %v795
    %797 = vdwg.mxu0
    %798 = vmatpush.msra.mxu0 %v369
    %799 = vmatpush.msra.mxu0 %v368
    %800 = vmatpush.msra.mxu0 %v367
    %801 = vmatpush.msra.mxu0 %v366
    %802 = vmatpush.msra.mxu0 %v365
    %803 = vmatpush.msra.mxu0 %v364
    %804 = vmatpush.msra.mxu0 %v363
    %805 = vmatpush.msra.mxu0 %v362
    %806 = vmatpush.msra.mxu0 %v361
    %807 = vmatpush.msra.mxu0 %v360
    %808 = vmatpush.msra.mxu0 %v359
    %809 = vmatpush.msra.mxu0 %v358
    %810 = vmatpush.msra.mxu0 %v357
    %811 = vmatpush.msra.mxu0 %v356
    %812 = vmatpush.msra.mxu0 %v355
    %813 = vmatpush.msra.mxu0 %v354
    %814 = vmatmul.f32.gmra.mxu0 %v120
    %v815 = vpop.f32.mrf.mxu0
    %v816 = vadd.f32 %v796, %v815
    %817 = vdwg.mxu0
    %818 = vmatpush.msra.mxu0 %v385
    %819 = vmatpush.msra.mxu0 %v384
    %820 = vmatpush.msra.mxu0 %v383
    %821 = vmatpush.msra.mxu0 %v382
    %822 = vmatpush.msra.mxu0 %v381
    %823 = vmatpush.msra.mxu0 %v380
    %824 = vmatpush.msra.mxu0 %v379
    %825 = vmatpush.msra.mxu0 %v378
    %826 = vmatpush.msra.mxu0 %v377
    %827 = vmatpush.msra.mxu0 %v376
    %828 = vmatpush.msra.mxu0 %v375
    %829 = vmatpush.msra.mxu0 %v374
    %830 = vmatpush.msra.mxu0 %v373
    %831 = vmatpush.msra.mxu0 %v372
    %832 = vmatpush.msra.mxu0 %v371
    %833 = vmatpush.msra.mxu0 %v370
    %834 = vmatmul.f32.gmra.mxu0 %v121
    %v835 = vpop.f32.mrf.mxu0
    %v836 = vadd.f32 %v816, %v835
    %837 = vdwg.mxu0
    %838 = vmatpush.msra.mxu0 %v401
    %839 = vmatpush.msra.mxu0 %v400
    %840 = vmatpush.msra.mxu0 %v399
    %841 = vmatpush.msra.mxu0 %v398
    %842 = vmatpush.msra.mxu0 %v397
    %843 = vmatpush.msra.mxu0 %v396
    %844 = vmatpush.msra.mxu0 %v395
    %845 = vmatpush.msra.mxu0 %v394
    %846 = vmatpush.msra.mxu0 %v393
    %847 = vmatpush.msra.mxu0 %v392
    %848 = vmatpush.msra.mxu0 %v391
    %849 = vmatpush.msra.mxu0 %v390
    %850 = vmatpush.msra.mxu0 %v389
    %851 = vmatpush.msra.mxu0 %v388
    %852 = vmatpush.msra.mxu0 %v387
    %853 = vmatpush.msra.mxu0 %v386
    %854 = vmatmul.f32.gmra.mxu0 %v122
    %v855 = vpop.f32.mrf.mxu0
    %v856 = vadd.f32 %v836, %v855
    %857 = vdwg.mxu0
    %858 = vmatpush.msra.mxu0 %v417
    %859 = vmatpush.msra.mxu0 %v416
    %860 = vmatpush.msra.mxu0 %v415
    %861 = vmatpush.msra.mxu0 %v414
    %862 = vmatpush.msra.mxu0 %v413
    %863 = vmatpush.msra.mxu0 %v412
    %864 = vmatpush.msra.mxu0 %v411
    %865 = vmatpush.msra.mxu0 %v410
    %866 = vmatpush.msra.mxu0 %v409
    %867 = vmatpush.msra.mxu0 %v408
    %868 = vmatpush.msra.mxu0 %v407
    %869 = vmatpush.msra.mxu0 %v406
    %870 = vmatpush.msra.mxu0 %v405
    %871 = vmatpush.msra.mxu0 %v404
    %872 = vmatpush.msra.mxu0 %v403
    %873 = vmatpush.msra.mxu0 %v402
    %874 = vmatmul.f32.gmra.mxu0 %v123
    %v875 = vpop.f32.mrf.mxu0
    %v876 = vadd.f32 %v856, %v875
    %877 = vdwg.mxu0
    %878 = vmatpush.msra.mxu0 %v433
    %879 = vmatpush.msra.mxu0 %v432
    %880 = vmatpush.msra.mxu0 %v431
    %881 = vmatpush.msra.mxu0 %v430
    %882 = vmatpush.msra.mxu0 %v429
    %883 = vmatpush.msra.mxu0 %v428
    %884 = vmatpush.msra.mxu0 %v427
    %885 = vmatpush.msra.mxu0 %v426
    %886 = vmatpush.msra.mxu0 %v425
    %887 = vmatpush.msra.mxu0 %v424
    %888 = vmatpush.msra.mxu0 %v423
    %889 = vmatpush.msra.mxu0 %v422
    %890 = vmatpush.msra.mxu0 %v421
    %891 = vmatpush.msra.mxu0 %v420
    %892 = vmatpush.msra.mxu0 %v419
    %893 = vmatpush.msra.mxu0 %v418
    %894 = vmatmul.f32.gmra.mxu0 %v124
    %v895 = vpop.f32.mrf.mxu0
    %v896 = vadd.f32 %v876, %v895
    %897 = vdwg.mxu0
    %898 = vmatpush.msra.mxu0 %v449
    %899 = vmatpush.msra.mxu0 %v448
    %900 = vmatpush.msra.mxu0 %v447
    %901 = vmatpush.msra.mxu0 %v446
    %902 = vmatpush.msra.mxu0 %v445
    %903 = vmatpush.msra.mxu0 %v444
    %904 = vmatpush.msra.mxu0 %v443
    %905 = vmatpush.msra.mxu0 %v442
    %906 = vmatpush.msra.mxu0 %v441
    %907 = vmatpush.msra.mxu0 %v440
    %908 = vmatpush.msra.mxu0 %v439
    %909 = vmatpush.msra.mxu0 %v438
    %910 = vmatpush.msra.mxu0 %v437
    %911 = vmatpush.msra.mxu0 %v436
    %912 = vmatpush.msra.mxu0 %v435
    %913 = vmatpush.msra.mxu0 %v434
    %914 = vmatmul.f32.gmra.mxu0 %v125
    %v915 = vpop.f32.mrf.mxu0
    %v916 = vadd.f32 %v896, %v915
    %917 = vdwg.mxu0
    %918 = vmatpush.msra.mxu0 %v465
    %919 = vmatpush.msra.mxu0 %v464
    %920 = vmatpush.msra.mxu0 %v463
    %921 = vmatpush.msra.mxu0 %v462
    %922 = vmatpush.msra.mxu0 %v461
    %923 = vmatpush.msra.mxu0 %v460
    %924 = vmatpush.msra.mxu0 %v459
    %925 = vmatpush.msra.mxu0 %v458
    %926 = vmatpush.msra.mxu0 %v457
    %927 = vmatpush.msra.mxu0 %v456
    %928 = vmatpush.msra.mxu0 %v455
    %929 = vmatpush.msra.mxu0 %v454
    %930 = vmatpush.msra.mxu0 %v453
    %931 = vmatpush.msra.mxu0 %v452
    %932 = vmatpush.msra.mxu0 %v451
    %933 = vmatpush.msra.mxu0 %v450
    %934 = vmatmul.f32.gmra.mxu0 %v126
    %v935 = vpop.f32.mrf.mxu0
    %v936 = vadd.f32 %v916, %v935
    %937 = vdwg.mxu0
    %938 = vmatpush.msra.mxu0 %v481
    %939 = vmatpush.msra.mxu0 %v480
    %940 = vmatpush.msra.mxu0 %v479
    %941 = vmatpush.msra.mxu0 %v478
    %942 = vmatpush.msra.mxu0 %v477
    %943 = vmatpush.msra.mxu0 %v476
    %944 = vmatpush.msra.mxu0 %v475
    %945 = vmatpush.msra.mxu0 %v474
    %946 = vmatpush.msra.mxu0 %v473
    %947 = vmatpush.msra.mxu0 %v472
    %948 = vmatpush.msra.mxu0 %v471
    %949 = vmatpush.msra.mxu0 %v470
    %950 = vmatpush.msra.mxu0 %v469
    %951 = vmatpush.msra.mxu0 %v468
    %952 = vmatpush.msra.mxu0 %v467
    %953 = vmatpush.msra.mxu0 %v466
    %954 = vmatmul.f32.gmra.mxu0 %v127
    %v955 = vpop.f32.mrf.mxu0
    %v956 = vadd.f32 %v936, %v955
    %957 = vdwg.mxu0
    %958 = vmatpush.msra.mxu0 %v497
    %959 = vmatpush.msra.mxu0 %v496
    %960 = vmatpush.msra.mxu0 %v495
    %961 = vmatpush.msra.mxu0 %v494
    %962 = vmatpush.msra.mxu0 %v493
    %963 = vmatpush.msra.mxu0 %v492
    %964 = vmatpush.msra.mxu0 %v491
    %965 = vmatpush.msra.mxu0 %v490
    %966 = vmatpush.msra.mxu0 %v489
    %967 = vmatpush.msra.mxu0 %v488
    %968 = vmatpush.msra.mxu0 %v487
    %969 = vmatpush.msra.mxu0 %v486
    %970 = vmatpush.msra.mxu0 %v485
    %971 = vmatpush.msra.mxu0 %v484
    %972 = vmatpush.msra.mxu0 %v483
    %973 = vmatpush.msra.mxu0 %v482
    %974 = vmatmul.f32.gmra.mxu0 %v128
    %v975 = vpop.f32.mrf.mxu0
    %v976 = vadd.f32 %v956, %v975
    %977 = vdwg.mxu0
    %978 = vmatpush.msra.mxu0 %v513
    %979 = vmatpush.msra.mxu0 %v512
    %980 = vmatpush.msra.mxu0 %v511
    %981 = vmatpush.msra.mxu0 %v510
    %982 = vmatpush.msra.mxu0 %v509
    %983 = vmatpush.msra.mxu0 %v508
    %984 = vmatpush.msra.mxu0 %v507
    %985 = vmatpush.msra.mxu0 %v506
    %986 = vmatpush.msra.mxu0 %v505
    %987 = vmatpush.msra.mxu0 %v504
    %988 = vmatpush.msra.mxu0 %v503
    %989 = vmatpush.msra.mxu0 %v502
    %990 = vmatpush.msra.mxu0 %v501
    %991 = vmatpush.msra.mxu0 %v500
    %992 = vmatpush.msra.mxu0 %v499
    %993 = vmatpush.msra.mxu0 %v498
    %994 = vmatmul.f32.gmra.mxu0 %v129
    %v995 = vpop.f32.mrf.mxu0
    %v996 = vadd.f32 %v976, %v995
    %997 = vdwg.mxu0
    %v998 = vmax.f32 %v996, 0.0
    %v999 = vld [vmem:[%s3] sm:$0xff]
    %v1000 = vld [vmem:[%s3 + $0x8] sm:$0xff]
    %v1001 = vld [vmem:[%s3 + $0x10] sm:$0xff]
    %v1002 = vld [vmem:[%s3 + $0x18] sm:$0xff]
    %v1003 = vld [vmem:[%s3 + $0x20] sm:$0xff]
    %v1004 = vld [vmem:[%s3 + $0x28] sm:$0xff]
    %v1005 = vld [vmem:[%s3 + $0x30] sm:$0xff]
    %v1006 = vld [vmem:[%s3 + $0x38] sm:$0xff]
    %v1007 = vld [vmem:[%s3 + $0x40] sm:$0xff]
    %v1008 = vld [vmem:[%s3 + $0x48] sm:$0xff]
    %v1009 = vld [vmem:[%s3 + $0x50] sm:$0xff]
    %v1010 = vld [vmem:[%s3 + $0x58] sm:$0xff]
    %v1011 = vld [vmem:[%s3 + $0x60] sm:$0xff]
    %v1012 = vld [vmem:[%s3 + $0x68] sm:$0xff]
    %v1013 = vld [vmem:[%s3 + $0x70] sm:$0xff]
    %v1014 = vld [vmem:[%s3 + $0x78] sm:$0xff]
    %v1015 = vld [vmem:[%s4] sm:$0x1]
    %v1017 = vperm.slane %v1015, 0
    %1019 = vmatpush.msra.mxu0 %v1014
    %1020 = vmatpush.msra.mxu0 %v1013
    %1021 = vmatpush.msra.mxu0 %v1012
    %1022 = vmatpush.msra.mxu0 %v1011
    %1023 = vmatpush.msra.mxu0 %v1010
    %1024 = vmatpush.msra.mxu0 %v1009
    %1025 = vmatpush.msra.mxu0 %v1008
    %1026 = vmatpush.msra.mxu0 %v1007
    %1027 = vmatpush.msra.mxu0 %v1006
    %1028 = vmatpush.msra.mxu0 %v1005
    %1029 = vmatpush.msra.mxu0 %v1004
    %1030 = vmatpush.msra.mxu0 %v1003
    %1031 = vmatpush.msra.mxu0 %v1002
    %1032 = vmatpush.msra.mxu0 %v1001
    %1033 = vmatpush.msra.mxu0 %v1000
    %1034 = vmatpush.msra.mxu0 %v999
    %1035 = vmatmul.f32.gmra.mxu0 %v998
    %v1036 = vpop.f32.mrf.mxu0
    %v1037 = vadd.f32 %v1017, %v1036
    %1038 = vdwg.mxu0
    %1039 = vst [vmem:[%s10] sm:$0xff] %v1037
    %v1040 = vld [vmem:[%s5] sm:$0xff]
    %v1041 = vld [vmem:[%s5 + $0x8] sm:$0xff]
    %v1042 = vld [vmem:[%s5 + $0x10] sm:$0xff]
    %v1043 = vld [vmem:[%s5 + $0x18] sm:$0xff]
    %v1044 = vld [vmem:[%s5 + $0x20] sm:$0xff]
    %v1045 = vld [vmem:[%s5 + $0x28] sm:$0xff]
    %v1046 = vld [vmem:[%s5 + $0x30] sm:$0xff]
    %v1047 = vld [vmem:[%s5 + $0x38] sm:$0xff]
    %v1048 = vld [vmem:[%s5 + $0x40] sm:$0xff]
    %v1049 = vld [vmem:[%s5 + $0x48] sm:$0xff]
    %v1050 = vld [vmem:[%s5 + $0x50] sm:$0xff]
    %v1051 = vld [vmem:[%s5 + $0x58] sm:$0xff]
    %v1052 = vld [vmem:[%s5 + $0x60] sm:$0xff]
    %v1053 = vld [vmem:[%s5 + $0x68] sm:$0xff]
    %v1054 = vld [vmem:[%s5 + $0x70] sm:$0xff]
    %v1055 = vld [vmem:[%s5 + $0x78] sm:$0xff]
    %v1056 = vld [vmem:[#allocation6] sm:$0x1]
    %v1058 = vperm.slane %v1056, 0
    %1060 = vmatpush.msra.mxu0 %v1055
    %1061 = vmatpush.msra.mxu0 %v1054
    %1062 = vmatpush.msra.mxu0 %v1053
    %1063 = vmatpush.msra.mxu0 %v1052
    %1064 = vmatpush.msra.mxu0 %v1051
    %1065 = vmatpush.msra.mxu0 %v1050
    %1066 = vmatpush.msra.mxu0 %v1049
    %1067 = vmatpush.msra.mxu0 %v1048
    %1068 = vmatpush.msra.mxu0 %v1047
    %1069 = vmatpush.msra.mxu0 %v1046
    %1070 = vmatpush.msra.mxu0 %v1045
    %1071 = vmatpush.msra.mxu0 %v1044
    %1072 = vmatpush.msra.mxu0 %v1043
    %1073 = vmatpush.msra.mxu0 %v1042
    %1074 = vmatpush.msra.mxu0 %v1041
    %1075 = vmatpush.msra.mxu0 %v1040
    %1076 = vmatmul.f32.gmra.mxu0 %v1037
    %v1077 = vpop.f32.mrf.mxu0
    %v1078 = vadd.f32 %v1058, %v1077
    %1079 = vdwg.mxu0
    %v1080 = vmax.f32 %v1078, 0.0
    %v1081 = vld [vmem:[#allocation7] sm:$0xff]
    %v1082 = vld [vmem:[#allocation7 + $0x8] sm:$0xff]
    %v1083 = vld [vmem:[#allocation7 + $0x10] sm:$0xff]
    %v1084 = vld [vmem:[#allocation7 + $0x18] sm:$0xff]
    %v1085 = vld [vmem:[#allocation7 + $0x20] sm:$0xff]
    %v1086 = vld [vmem:[#allocation7 + $0x28] sm:$0xff]
    %v1087 = vld [vmem:[#allocation7 + $0x30] sm:$0xff]
    %v1088 = vld [vmem:[#allocation7 + $0x38] sm:$0xff]
    %v1089 = vld [vmem:[#allocation7 + $0xc0] sm:$0xff]
    %v1090 = vld [vmem:[#allocation7 + $0xc8] sm:$0xff]
    %v1091 = vld [vmem:[#allocation7 + $0xd0] sm:$0xff]
    %v1092 = vld [vmem:[#allocation7 + $0xd8] sm:$0xff]
    %v1093 = vld [vmem:[#allocation7 + $0xe0] sm:$0xff]
    %v1094 = vld [vmem:[#allocation7 + $0xe8] sm:$0xff]
    %v1095 = vld [vmem:[#allocation7 + $0xf0] sm:$0xff]
    %v1096 = vld [vmem:[#allocation7 + $0xf8] sm:$0xff]
    %v1097 = vld [vmem:[#allocation7 + $0x180] sm:$0xff]
    %v1098 = vld [vmem:[#allocation7 + $0x188] sm:$0xff]
    %v1099 = vld [vmem:[#allocation7 + $0x190] sm:$0xff]
    %v1100 = vld [vmem:[#allocation7 + $0x198] sm:$0xff]
    %v1101 = vld [vmem:[#allocation7 + $0x1a0] sm:$0xff]
    %v1102 = vld [vmem:[#allocation7 + $0x1a8] sm:$0xff]
    %v1103 = vld [vmem:[#allocation7 + $0x1b0] sm:$0xff]
    %v1104 = vld [vmem:[#allocation7 + $0x1b8] sm:$0xff]
    %v1105 = vld [vmem:[#allocation7 + $0x240] sm:$0xff]
    %v1106 = vld [vmem:[#allocation7 + $0x248] sm:$0xff]
    %v1107 = vld [vmem:[#allocation7 + $0x250] sm:$0xff]
    %v1108 = vld [vmem:[#allocation7 + $0x258] sm:$0xff]
    %v1109 = vld [vmem:[#allocation7 + $0x260] sm:$0xff]
    %v1110 = vld [vmem:[#allocation7 + $0x268] sm:$0xff]
    %v1111 = vld [vmem:[#allocation7 + $0x270] sm:$0xff]
    %v1112 = vld [vmem:[#allocation7 + $0x278] sm:$0xff]
    %v1113 = vld [vmem:[#allocation7 + $0x300] sm:$0xff]
    %v1114 = vld [vmem:[#allocation7 + $0x308] sm:$0xff]
    %v1115 = vld [vmem:[#allocation7 + $0x310] sm:$0xff]
    %v1116 = vld [vmem:[#allocation7 + $0x318] sm:$0xff]
    %v1117 = vld [vmem:[#allocation7 + $0x320] sm:$0xff]
    %v1118 = vld [vmem:[#allocation7 + $0x328] sm:$0xff]
    %v1119 = vld [vmem:[#allocation7 + $0x330] sm:$0xff]
    %v1120 = vld [vmem:[#allocation7 + $0x338] sm:$0xff]
    %v1121 = vld [vmem:[#allocation7 + $0x3c0] sm:$0xff]
    %v1122 = vld [vmem:[#allocation7 + $0x3c8] sm:$0xff]
    %v1123 = vld [vmem:[#allocation7 + $0x3d0] sm:$0xff]
    %v1124 = vld [vmem:[#allocation7 + $0x3d8] sm:$0xff]
    %v1125 = vld [vmem:[#allocation7 + $0x3e0] sm:$0xff]
    %v1126 = vld [vmem:[#allocation7 + $0x3e8] sm:$0xff]
    %v1127 = vld [vmem:[#allocation7 + $0x3f0] sm:$0xff]
    %v1128 = vld [vmem:[#allocation7 + $0x3f8] sm:$0xff]
    %v1129 = vld [vmem:[#allocation7 + $0x480] sm:$0xff]
    %v1130 = vld [vmem:[#allocation7 + $0x488] sm:$0xff]
    %v1131 = vld [vmem:[#allocation7 + $0x490] sm:$0xff]
    %v1132 = vld [vmem:[#allocation7 + $0x498] sm:$0xff]
    %v1133 = vld [vmem:[#allocation7 + $0x4a0] sm:$0xff]
    %v1134 = vld [vmem:[#allocation7 + $0x4a8] sm:$0xff]
    %v1135 = vld [vmem:[#allocation7 + $0x4b0] sm:$0xff]
    %v1136 = vld [vmem:[#allocation7 + $0x4b8] sm:$0xff]
    %v1137 = vld [vmem:[#allocation7 + $0x540] sm:$0xff]
    %v1138 = vld [vmem:[#allocation7 + $0x548] sm:$0xff]
    %v1139 = vld [vmem:[#allocation7 + $0x550] sm:$0xff]
    %v1140 = vld [vmem:[#allocation7 + $0x558] sm:$0xff]
    %v1141 = vld [vmem:[#allocation7 + $0x560] sm:$0xff]
    %v1142 = vld [vmem:[#allocation7 + $0x568] sm:$0xff]
    %v1143 = vld [vmem:[#allocation7 + $0x570] sm:$0xff]
    %v1144 = vld [vmem:[#allocation7 + $0x578] sm:$0xff]
    %v1145 = vld [vmem:[#allocation7 + $0x600] sm:$0xff]
    %v1146 = vld [vmem:[#allocation7 + $0x608] sm:$0xff]
    %v1147 = vld [vmem:[#allocation7 + $0x610] sm:$0xff]
    %v1148 = vld [vmem:[#allocation7 + $0x618] sm:$0xff]
    %v1149 = vld [vmem:[#allocation7 + $0x620] sm:$0xff]
    %v1150 = vld [vmem:[#allocation7 + $0x628] sm:$0xff]
    %v1151 = vld [vmem:[#allocation7 + $0x630] sm:$0xff]
    %v1152 = vld [vmem:[#allocation7 + $0x638] sm:$0xff]
    %v1153 = vld [vmem:[#allocation7 + $0x6c0] sm:$0xff]
    %v1154 = vld [vmem:[#allocation7 + $0x6c8] sm:$0xff]
    %v1155 = vld [vmem:[#allocation7 + $0x6d0] sm:$0xff]
    %v1156 = vld [vmem:[#allocation7 + $0x6d8] sm:$0xff]
    %v1157 = vld [vmem:[#allocation7 + $0x6e0] sm:$0xff]
    %v1158 = vld [vmem:[#allocation7 + $0x6e8] sm:$0xff]
    %v1159 = vld [vmem:[#allocation7 + $0x6f0] sm:$0xff]
    %v1160 = vld [vmem:[#allocation7 + $0x6f8] sm:$0xff]
    %v1161 = vld [vmem:[#allocation7 + $0x780] sm:$0xff]
    %v1162 = vld [vmem:[#allocation7 + $0x788] sm:$0xff]
    %v1163 = vld [vmem:[#allocation7 + $0x790] sm:$0xff]
    %v1164 = vld [vmem:[#allocation7 + $0x798] sm:$0xff]
    %v1165 = vld [vmem:[#allocation7 + $0x7a0] sm:$0xff]
    %v1166 = vld [vmem:[#allocation7 + $0x7a8] sm:$0xff]
    %v1167 = vld [vmem:[#allocation7 + $0x7b0] sm:$0xff]
    %v1168 = vld [vmem:[#allocation7 + $0x7b8] sm:$0xff]
    %v1169 = vld [vmem:[#allocation7 + $0x840] sm:$0xff]
    %v1170 = vld [vmem:[#allocation7 + $0x848] sm:$0xff]
    %v1171 = vld [vmem:[#allocation7 + $0x850] sm:$0xff]
    %v1172 = vld [vmem:[#allocation7 + $0x858] sm:$0xff]
    %v1173 = vld [vmem:[#allocation7 + $0x860] sm:$0xff]
    %v1174 = vld [vmem:[#allocation7 + $0x868] sm:$0xff]
    %v1175 = vld [vmem:[#allocation7 + $0x870] sm:$0xff]
    %v1176 = vld [vmem:[#allocation7 + $0x878] sm:$0xff]
    %v1177 = vld [vmem:[#allocation7 + $0x900] sm:$0xff]
    %v1178 = vld [vmem:[#allocation7 + $0x908] sm:$0xff]
    %v1179 = vld [vmem:[#allocation7 + $0x910] sm:$0xff]
    %v1180 = vld [vmem:[#allocation7 + $0x918] sm:$0xff]
    %v1181 = vld [vmem:[#allocation7 + $0x920] sm:$0xff]
    %v1182 = vld [vmem:[#allocation7 + $0x928] sm:$0xff]
    %v1183 = vld [vmem:[#allocation7 + $0x930] sm:$0xff]
    %v1184 = vld [vmem:[#allocation7 + $0x938] sm:$0xff]
    %v1185 = vld [vmem:[#allocation7 + $0x9c0] sm:$0xff]
    %v1186 = vld [vmem:[#allocation7 + $0x9c8] sm:$0xff]
    %v1187 = vld [vmem:[#allocation7 + $0x9d0] sm:$0xff]
    %v1188 = vld [vmem:[#allocation7 + $0x9d8] sm:$0xff]
    %v1189 = vld [vmem:[#allocation7 + $0x9e0] sm:$0xff]
    %v1190 = vld [vmem:[#allocation7 + $0x9e8] sm:$0xff]
    %v1191 = vld [vmem:[#allocation7 + $0x9f0] sm:$0xff]
    %v1192 = vld [vmem:[#allocation7 + $0x9f8] sm:$0xff]
    %v1193 = vld [vmem:[#allocation7 + $0xa80] sm:$0xff]
    %v1194 = vld [vmem:[#allocation7 + $0xa88] sm:$0xff]
    %v1195 = vld [vmem:[#allocation7 + $0xa90] sm:$0xff]
    %v1196 = vld [vmem:[#allocation7 + $0xa98] sm:$0xff]
    %v1197 = vld [vmem:[#allocation7 + $0xaa0] sm:$0xff]
    %v1198 = vld [vmem:[#allocation7 + $0xaa8] sm:$0xff]
    %v1199 = vld [vmem:[#allocation7 + $0xab0] sm:$0xff]
    %v1200 = vld [vmem:[#allocation7 + $0xab8] sm:$0xff]
    %v1201 = vld [vmem:[#allocation7 + $0xb40] sm:$0xff]
    %v1202 = vld [vmem:[#allocation7 + $0xb48] sm:$0xff]
    %v1203 = vld [vmem:[#allocation7 + $0xb50] sm:$0xff]
    %v1204 = vld [vmem:[#allocation7 + $0xb58] sm:$0xff]
    %v1205 = vld [vmem:[#allocation7 + $0xb60] sm:$0xff]
    %v1206 = vld [vmem:[#allocation7 + $0xb68] sm:$0xff]
    %v1207 = vld [vmem:[#allocation7 + $0xb70] sm:$0xff]
    %v1208 = vld [vmem:[#allocation7 + $0xb78] sm:$0xff]
    %v1209 = vld [vmem:[#allocation9] sm:$0xff]
    %v1211 = vperm.slane %v1209, 0
    %v1212 = vperm.slane %v1209, 1
    %v1213 = vperm.slane %v1209, 2
    %v1214 = vperm.slane %v1209, 3
    %v1215 = vperm.slane %v1209, 4
    %v1216 = vperm.slane %v1209, 5
    %v1217 = vperm.slane %v1209, 6
    %v1218 = vperm.slane %v1209, 7
    %1227 = vmatpush.msra.mxu0 %v1201
    %1228 = vmatpush.msra.mxu0 %v1193
    %1229 = vmatpush.msra.mxu0 %v1185
    %1230 = vmatpush.msra.mxu0 %v1177
    %1231 = vmatpush.msra.mxu0 %v1169
    %1232 = vmatpush.msra.mxu0 %v1161
    %1233 = vmatpush.msra.mxu0 %v1153
    %1234 = vmatpush.msra.mxu0 %v1145
    %1235 = vmatpush.msra.mxu0 %v1137
    %1236 = vmatpush.msra.mxu0 %v1129
    %1237 = vmatpush.msra.mxu0 %v1121
    %1238 = vmatpush.msra.mxu0 %v1113
    %1239 = vmatpush.msra.mxu0 %v1105
    %1240 = vmatpush.msra.mxu0 %v1097
    %1241 = vmatpush.msra.mxu0 %v1089
    %1242 = vmatpush.msra.mxu0 %v1081
    %1243 = vmatmul.f32.gmra.mxu0 %v1080
    %v1244 = vpop.f32.mrf.mxu0
    %v1245 = vadd.f32 %v1211, %v1244
    %1246 = vdwg.mxu0
    %1247 = vmatpush.msra.mxu0 %v1202
    %1248 = vmatpush.msra.mxu0 %v1194
    %1249 = vmatpush.msra.mxu0 %v1186
    %1250 = vmatpush.msra.mxu0 %v1178
    %1251 = vmatpush.msra.mxu0 %v1170
    %1252 = vmatpush.msra.mxu0 %v1162
    %1253 = vmatpush.msra.mxu0 %v1154
    %1254 = vmatpush.msra.mxu0 %v1146
    %1255 = vmatpush.msra.mxu0 %v1138
    %1256 = vmatpush.msra.mxu0 %v1130
    %1257 = vmatpush.msra.mxu0 %v1122
    %1258 = vmatpush.msra.mxu0 %v1114
    %1259 = vmatpush.msra.mxu0 %v1106
    %1260 = vmatpush.msra.mxu0 %v1098
    %1261 = vmatpush.msra.mxu0 %v1090
    %1262 = vmatpush.msra.mxu0 %v1082
    %1263 = vmatmul.f32.gmra.mxu0 %v1080
    %v1264 = vpop.f32.mrf.mxu0
    %v1265 = vadd.f32 %v1212, %v1264
    %1266 = vdwg.mxu0
    %1267 = vmatpush.msra.mxu0 %v1203
    %1268 = vmatpush.msra.mxu0 %v1195
    %1269 = vmatpush.msra.mxu0 %v1187
    %1270 = vmatpush.msra.mxu0 %v1179
    %1271 = vmatpush.msra.mxu0 %v1171
    %1272 = vmatpush.msra.mxu0 %v1163
    %1273 = vmatpush.msra.mxu0 %v1155
    %1274 = vmatpush.msra.mxu0 %v1147
    %1275 = vmatpush.msra.mxu0 %v1139
    %1276 = vmatpush.msra.mxu0 %v1131
    %1277 = vmatpush.msra.mxu0 %v1123
    %1278 = vmatpush.msra.mxu0 %v1115
    %1279 = vmatpush.msra.mxu0 %v1107
    %1280 = vmatpush.msra.mxu0 %v1099
    %1281 = vmatpush.msra.mxu0 %v1091
    %1282 = vmatpush.msra.mxu0 %v1083
    %1283 = vmatmul.f32.gmra.mxu0 %v1080
    %v1284 = vpop.f32.mrf.mxu0
    %v1285 = vadd.f32 %v1213, %v1284
    %1286 = vdwg.mxu0
    %1287 = vmatpush.msra.mxu0 %v1204
    %1288 = vmatpush.msra.mxu0 %v1196
    %1289 = vmatpush.msra.mxu0 %v1188
    %1290 = vmatpush.msra.mxu0 %v1180
    %1291 = vmatpush.msra.mxu0 %v1172
    %1292 = vmatpush.msra.mxu0 %v1164
    %1293 = vmatpush.msra.mxu0 %v1156
    %1294 = vmatpush.msra.mxu0 %v1148
    %1295 = vmatpush.msra.mxu0 %v1140
    %1296 = vmatpush.msra.mxu0 %v1132
    %1297 = vmatpush.msra.mxu0 %v1124
    %1298 = vmatpush.msra.mxu0 %v1116
    %1299 = vmatpush.msra.mxu0 %v1108
    %1300 = vmatpush.msra.mxu0 %v1100
    %1301 = vmatpush.msra.mxu0 %v1092
    %1302 = vmatpush.msra.mxu0 %v1084
    %1303 = vmatmul.f32.gmra.mxu0 %v1080
    %v1304 = vpop.f32.mrf.mxu0
    %v1305 = vadd.f32 %v1214, %v1304
    %1306 = vdwg.mxu0
    %1307 = vmatpush.msra.mxu0 %v1205
    %1308 = vmatpush.msra.mxu0 %v1197
    %1309 = vmatpush.msra.mxu0 %v1189
    %1310 = vmatpush.msra.mxu0 %v1181
    %1311 = vmatpush.msra.mxu0 %v1173
    %1312 = vmatpush.msra.mxu0 %v1165
    %1313 = vmatpush.msra.mxu0 %v1157
    %1314 = vmatpush.msra.mxu0 %v1149
    %1315 = vmatpush.msra.mxu0 %v1141
    %1316 = vmatpush.msra.mxu0 %v1133
    %1317 = vmatpush.msra.mxu0 %v1125
    %1318 = vmatpush.msra.mxu0 %v1117
    %1319 = vmatpush.msra.mxu0 %v1109
    %1320 = vmatpush.msra.mxu0 %v1101
    %1321 = vmatpush.msra.mxu0 %v1093
    %1322 = vmatpush.msra.mxu0 %v1085
    %1323 = vmatmul.f32.gmra.mxu0 %v1080
    %v1324 = vpop.f32.mrf.mxu0
    %v1325 = vadd.f32 %v1215, %v1324
    %1326 = vdwg.mxu0
    %1327 = vmatpush.msra.mxu0 %v1206
    %1328 = vmatpush.msra.mxu0 %v1198
    %1329 = vmatpush.msra.mxu0 %v1190
    %1330 = vmatpush.msra.mxu0 %v1182
    %1331 = vmatpush.msra.mxu0 %v1174
    %1332 = vmatpush.msra.mxu0 %v1166
    %1333 = vmatpush.msra.mxu0 %v1158
    %1334 = vmatpush.msra.mxu0 %v1150
    %1335 = vmatpush.msra.mxu0 %v1142
    %1336 = vmatpush.msra.mxu0 %v1134
    %1337 = vmatpush.msra.mxu0 %v1126
    %1338 = vmatpush.msra.mxu0 %v1118
    %1339 = vmatpush.msra.mxu0 %v1110
    %1340 = vmatpush.msra.mxu0 %v1102
    %1341 = vmatpush.msra.mxu0 %v1094
    %1342 = vmatpush.msra.mxu0 %v1086
    %1343 = vmatmul.f32.gmra.mxu0 %v1080
    %v1344 = vpop.f32.mrf.mxu0
    %v1345 = vadd.f32 %v1216, %v1344
    %1346 = vdwg.mxu0
    %1347 = vmatpush.msra.mxu0 %v1207
    %1348 = vmatpush.msra.mxu0 %v1199
    %1349 = vmatpush.msra.mxu0 %v1191
    %1350 = vmatpush.msra.mxu0 %v1183
    %1351 = vmatpush.msra.mxu0 %v1175
    %1352 = vmatpush.msra.mxu0 %v1167
    %1353 = vmatpush.msra.mxu0 %v1159
    %1354 = vmatpush.msra.mxu0 %v1151
    %1355 = vmatpush.msra.mxu0 %v1143
    %1356 = vmatpush.msra.mxu0 %v1135
    %1357 = vmatpush.msra.mxu0 %v1127
    %1358 = vmatpush.msra.mxu0 %v1119
    %1359 = vmatpush.msra.mxu0 %v1111
    %1360 = vmatpush.msra.mxu0 %v1103
    %1361 = vmatpush.msra.mxu0 %v1095
    %1362 = vmatpush.msra.mxu0 %v1087
    %1363 = vmatmul.f32.gmra.mxu0 %v1080
    %v1364 = vpop.f32.mrf.mxu0
    %v1365 = vadd.f32 %v1217, %v1364
    %1366 = vdwg.mxu0
    %1367 = vmatpush.msra.mxu0 %v1208
    %1368 = vmatpush.msra.mxu0 %v1200
    %1369 = vmatpush.msra.mxu0 %v1192
    %1370 = vmatpush.msra.mxu0 %v1184
    %1371 = vmatpush.msra.mxu0 %v1176
    %1372 = vmatpush.msra.mxu0 %v1168
    %1373 = vmatpush.msra.mxu0 %v1160
    %1374 = vmatpush.msra.mxu0 %v1152
    %1375 = vmatpush.msra.mxu0 %v1144
    %1376 = vmatpush.msra.mxu0 %v1136
    %1377 = vmatpush.msra.mxu0 %v1128
    %1378 = vmatpush.msra.mxu0 %v1120
    %1379 = vmatpush.msra.mxu0 %v1112
    %1380 = vmatpush.msra.mxu0 %v1104
    %1381 = vmatpush.msra.mxu0 %v1096
    %1382 = vmatpush.msra.mxu0 %v1088
    %1383 = vmatmul.f32.gmra.mxu0 %v1080
    %v1384 = vpop.f32.mrf.mxu0
    %v1385 = vadd.f32 %v1218, %v1384
    %1386 = vdwg.mxu0
    %v1387 = vtanh.pop %v1245
    %v1388 = vtanh.pop %v1265
    %v1389 = vtanh.pop %v1285
    %v1390 = vtanh.pop %v1305
    %v1391 = vtanh.pop %v1325
    %v1392 = vtanh.pop %v1345
    %v1393 = vtanh.pop %v1365
    %v1394 = vtanh.pop %v1385
    %1395 = vst [vmem:[%s9] sm:$0xff] %v1387
    %1396 = vst [vmem:[%s9 + $0x8] sm:$0xff] %v1388
    %1397 = vst [vmem:[%s9 + $0x10] sm:$0xff] %v1389
    %1398 = vst [vmem:[%s9 + $0x18] sm:$0xff] %v1390
    %1399 = vst [vmem:[%s9 + $0x20] sm:$0xff] %v1391
    %1400 = vst [vmem:[%s9 + $0x28] sm:$0xff] %v1392
    %1401 = vst [vmem:[%s9 + $0x30] sm:$0xff] %v1393
    %1402 = vst [vmem:[%s9 + $0x38] sm:$0xff] %v1394
    %v1403 = vld [vmem:[#allocation7 + $0x40] sm:$0xff]
    %v1404 = vld [vmem:[#allocation7 + $0x48] sm:$0xff]
    %v1405 = vld [vmem:[#allocation7 + $0x50] sm:$0xff]
    %v1406 = vld [vmem:[#allocation7 + $0x58] sm:$0xff]
    %v1407 = vld [vmem:[#allocation7 + $0x60] sm:$0xff]
    %v1408 = vld [vmem:[#allocation7 + $0x68] sm:$0xff]
    %v1409 = vld [vmem:[#allocation7 + $0x70] sm:$0xff]
    %v1410 = vld [vmem:[#allocation7 + $0x78] sm:$0xff]
    %v1411 = vld [vmem:[#allocation7 + $0x100] sm:$0xff]
    %v1412 = vld [vmem:[#allocation7 + $0x108] sm:$0xff]
    %v1413 = vld [vmem:[#allocation7 + $0x110] sm:$0xff]
    %v1414 = vld [vmem:[#allocation7 + $0x118] sm:$0xff]
    %v1415 = vld [vmem:[#allocation7 + $0x120] sm:$0xff]
    %v1416 = vld [vmem:[#allocation7 + $0x128] sm:$0xff]
    %v1417 = vld [vmem:[#allocation7 + $0x130] sm:$0xff]
    %v1418 = vld [vmem:[#allocation7 + $0x138] sm:$0xff]
    %v1419 = vld [vmem:[#allocation7 + $0x1c0] sm:$0xff]
    %v1420 = vld [vmem:[#allocation7 + $0x1c8] sm:$0xff]
    %v1421 = vld [vmem:[#allocation7 + $0x1d0] sm:$0xff]
    %v1422 = vld [vmem:[#allocation7 + $0x1d8] sm:$0xff]
    %v1423 = vld [vmem:[#allocation7 + $0x1e0] sm:$0xff]
    %v1424 = vld [vmem:[#allocation7 + $0x1e8] sm:$0xff]
    %v1425 = vld [vmem:[#allocation7 + $0x1f0] sm:$0xff]
    %v1426 = vld [vmem:[#allocation7 + $0x1f8] sm:$0xff]
    %v1427 = vld [vmem:[#allocation7 + $0x280] sm:$0xff]
    %v1428 = vld [vmem:[#allocation7 + $0x288] sm:$0xff]
    %v1429 = vld [vmem:[#allocation7 + $0x290] sm:$0xff]
    %v1430 = vld [vmem:[#allocation7 + $0x298] sm:$0xff]
    %v1431 = vld [vmem:[#allocation7 + $0x2a0] sm:$0xff]
    %v1432 = vld [vmem:[#allocation7 + $0x2a8] sm:$0xff]
    %v1433 = vld [vmem:[#allocation7 + $0x2b0] sm:$0xff]
    %v1434 = vld [vmem:[#allocation7 + $0x2b8] sm:$0xff]
    %v1435 = vld [vmem:[#allocation7 + $0x340] sm:$0xff]
    %v1436 = vld [vmem:[#allocation7 + $0x348] sm:$0xff]
    %v1437 = vld [vmem:[#allocation7 + $0x350] sm:$0xff]
    %v1438 = vld [vmem:[#allocation7 + $0x358] sm:$0xff]
    %v1439 = vld [vmem:[#allocation7 + $0x360] sm:$0xff]
    %v1440 = vld [vmem:[#allocation7 + $0x368] sm:$0xff]
    %v1441 = vld [vmem:[#allocation7 + $0x370] sm:$0xff]
    %v1442 = vld [vmem:[#allocation7 + $0x378] sm:$0xff]
    %v1443 = vld [vmem:[#allocation7 + $0x400] sm:$0xff]
    %v1444 = vld [vmem:[#allocation7 + $0x408] sm:$0xff]
    %v1445 = vld [vmem:[#allocation7 + $0x410] sm:$0xff]
    %v1446 = vld [vmem:[#allocation7 + $0x418] sm:$0xff]
    %v1447 = vld [vmem:[#allocation7 + $0x420] sm:$0xff]
    %v1448 = vld [vmem:[#allocation7 + $0x428] sm:$0xff]
    %v1449 = vld [vmem:[#allocation7 + $0x430] sm:$0xff]
    %v1450 = vld [vmem:[#allocation7 + $0x438] sm:$0xff]
    %v1451 = vld [vmem:[#allocation7 + $0x4c0] sm:$0xff]
    %v1452 = vld [vmem:[#allocation7 + $0x4c8] sm:$0xff]
    %v1453 = vld [vmem:[#allocation7 + $0x4d0] sm:$0xff]
    %v1454 = vld [vmem:[#allocation7 + $0x4d8] sm:$0xff]
    %v1455 = vld [vmem:[#allocation7 + $0x4e0] sm:$0xff]
    %v1456 = vld [vmem:[#allocation7 + $0x4e8] sm:$0xff]
    %v1457 = vld [vmem:[#allocation7 + $0x4f0] sm:$0xff]
    %v1458 = vld [vmem:[#allocation7 + $0x4f8] sm:$0xff]
    %v1459 = vld [vmem:[#allocation7 + $0x580] sm:$0xff]
    %v1460 = vld [vmem:[#allocation7 + $0x588] sm:$0xff]
    %v1461 = vld [vmem:[#allocation7 + $0x590] sm:$0xff]
    %v1462 = vld [vmem:[#allocation7 + $0x598] sm:$0xff]
    %v1463 = vld [vmem:[#allocation7 + $0x5a0] sm:$0xff]
    %v1464 = vld [vmem:[#allocation7 + $0x5a8] sm:$0xff]
    %v1465 = vld [vmem:[#allocation7 + $0x5b0] sm:$0xff]
    %v1466 = vld [vmem:[#allocation7 + $0x5b8] sm:$0xff]
    %v1467 = vld [vmem:[#allocation7 + $0x640] sm:$0xff]
    %v1468 = vld [vmem:[#allocation7 + $0x648] sm:$0xff]
    %v1469 = vld [vmem:[#allocation7 + $0x650] sm:$0xff]
    %v1470 = vld [vmem:[#allocation7 + $0x658] sm:$0xff]
    %v1471 = vld [vmem:[#allocation7 + $0x660] sm:$0xff]
    %v1472 = vld [vmem:[#allocation7 + $0x668] sm:$0xff]
    %v1473 = vld [vmem:[#allocation7 + $0x670] sm:$0xff]
    %v1474 = vld [vmem:[#allocation7 + $0x678] sm:$0xff]
    %v1475 = vld [vmem:[#allocation7 + $0x700] sm:$0xff]
    %v1476 = vld [vmem:[#allocation7 + $0x708] sm:$0xff]
    %v1477 = vld [vmem:[#allocation7 + $0x710] sm:$0xff]
    %v1478 = vld [vmem:[#allocation7 + $0x718] sm:$0xff]
    %v1479 = vld [vmem:[#allocation7 + $0x720] sm:$0xff]
    %v1480 = vld [vmem:[#allocation7 + $0x728] sm:$0xff]
    %v1481 = vld [vmem:[#allocation7 + $0x730] sm:$0xff]
    %v1482 = vld [vmem:[#allocation7 + $0x738] sm:$0xff]
    %v1483 = vld [vmem:[#allocation7 + $0x7c0] sm:$0xff]
    %v1484 = vld [vmem:[#allocation7 + $0x7c8] sm:$0xff]
    %v1485 = vld [vmem:[#allocation7 + $0x7d0] sm:$0xff]
    %v1486 = vld [vmem:[#allocation7 + $0x7d8] sm:$0xff]
    %v1487 = vld [vmem:[#allocation7 + $0x7e0] sm:$0xff]
    %v1488 = vld [vmem:[#allocation7 + $0x7e8] sm:$0xff]
    %v1489 = vld [vmem:[#allocation7 + $0x7f0] sm:$0xff]
    %v1490 = vld [vmem:[#allocation7 + $0x7f8] sm:$0xff]
    %v1491 = vld [vmem:[#allocation7 + $0x880] sm:$0xff]
    %v1492 = vld [vmem:[#allocation7 + $0x888] sm:$0xff]
    %v1493 = vld [vmem:[#allocation7 + $0x890] sm:$0xff]
    %v1494 = vld [vmem:[#allocation7 + $0x898] sm:$0xff]
    %v1495 = vld [vmem:[#allocation7 + $0x8a0] sm:$0xff]
    %v1496 = vld [vmem:[#allocation7 + $0x8a8] sm:$0xff]
    %v1497 = vld [vmem:[#allocation7 + $0x8b0] sm:$0xff]
    %v1498 = vld [vmem:[#allocation7 + $0x8b8] sm:$0xff]
    %v1499 = vld [vmem:[#allocation7 + $0x940] sm:$0xff]
    %v1500 = vld [vmem:[#allocation7 + $0x948] sm:$0xff]
    %v1501 = vld [vmem:[#allocation7 + $0x950] sm:$0xff]
    %v1502 = vld [vmem:[#allocation7 + $0x958] sm:$0xff]
    %v1503 = vld [vmem:[#allocation7 + $0x960] sm:$0xff]
    %v1504 = vld [vmem:[#allocation7 + $0x968] sm:$0xff]
    %v1505 = vld [vmem:[#allocation7 + $0x970] sm:$0xff]
    %v1506 = vld [vmem:[#allocation7 + $0x978] sm:$0xff]
    %v1507 = vld [vmem:[#allocation7 + $0xa00] sm:$0xff]
    %v1508 = vld [vmem:[#allocation7 + $0xa08] sm:$0xff]
    %v1509 = vld [vmem:[#allocation7 + $0xa10] sm:$0xff]
    %v1510 = vld [vmem:[#allocation7 + $0xa18] sm:$0xff]
    %v1511 = vld [vmem:[#allocation7 + $0xa20] sm:$0xff]
    %v1512 = vld [vmem:[#allocation7 + $0xa28] sm:$0xff]
    %v1513 = vld [vmem:[#allocation7 + $0xa30] sm:$0xff]
    %v1514 = vld [vmem:[#allocation7 + $0xa38] sm:$0xff]
    %v1515 = vld [vmem:[#allocation7 + $0xac0] sm:$0xff]
    %v1516 = vld [vmem:[#allocation7 + $0xac8] sm:$0xff]
    %v1517 = vld [vmem:[#allocation7 + $0xad0] sm:$0xff]
    %v1518 = vld [vmem:[#allocation7 + $0xad8] sm:$0xff]
    %v1519 = vld [vmem:[#allocation7 + $0xae0] sm:$0xff]
    %v1520 = vld [vmem:[#allocation7 + $0xae8] sm:$0xff]
    %v1521 = vld [vmem:[#allocation7 + $0xaf0] sm:$0xff]
    %v1522 = vld [vmem:[#allocation7 + $0xaf8] sm:$0xff]
    %v1523 = vld [vmem:[#allocation7 + $0xb80] sm:$0xff]
    %v1524 = vld [vmem:[#allocation7 + $0xb88] sm:$0xff]
    %v1525 = vld [vmem:[#allocation7 + $0xb90] sm:$0xff]
    %v1526 = vld [vmem:[#allocation7 + $0xb98] sm:$0xff]
    %v1527 = vld [vmem:[#allocation7 + $0xba0] sm:$0xff]
    %v1528 = vld [vmem:[#allocation7 + $0xba8] sm:$0xff]
    %v1529 = vld [vmem:[#allocation7 + $0xbb0] sm:$0xff]
    %v1530 = vld [vmem:[#allocation7 + $0xbb8] sm:$0xff]
    %v1531 = vld [vmem:[#allocation9 + $0x8] sm:$0xff]
    %v1533 = vperm.slane %v1531, 0
    %v1534 = vperm.slane %v1531, 1
    %v1535 = vperm.slane %v1531, 2
    %v1536 = vperm.slane %v1531, 3
    %v1537 = vperm.slane %v1531, 4
    %v1538 = vperm.slane %v1531, 5
    %v1539 = vperm.slane %v1531, 6
    %v1540 = vperm.slane %v1531, 7
    %1549 = vmatpush.msra.mxu0 %v1523
    %1550 = vmatpush.msra.mxu0 %v1515
    %1551 = vmatpush.msra.mxu0 %v1507
    %1552 = vmatpush.msra.mxu0 %v1499
    %1553 = vmatpush.msra.mxu0 %v1491
    %1554 = vmatpush.msra.mxu0 %v1483
    %1555 = vmatpush.msra.mxu0 %v1475
    %1556 = vmatpush.msra.mxu0 %v1467
    %1557 = vmatpush.msra.mxu0 %v1459
    %1558 = vmatpush.msra.mxu0 %v1451
    %1559 = vmatpush.msra.mxu0 %v1443
    %1560 = vmatpush.msra.mxu0 %v1435
    %1561 = vmatpush.msra.mxu0 %v1427
    %1562 = vmatpush.msra.mxu0 %v1419
    %1563 = vmatpush.msra.mxu0 %v1411
    %1564 = vmatpush.msra.mxu0 %v1403
    %1565 = vmatmul.f32.gmra.mxu0 %v1080
    %v1566 = vpop.f32.mrf.mxu0
    %v1567 = vadd.f32 %v1533, %v1566
    %1568 = vdwg.mxu0
    %1569 = vmatpush.msra.mxu0 %v1524
    %1570 = vmatpush.msra.mxu0 %v1516
    %1571 = vmatpush.msra.mxu0 %v1508
    %1572 = vmatpush.msra.mxu0 %v1500
    %1573 = vmatpush.msra.mxu0 %v1492
    %1574 = vmatpush.msra.mxu0 %v1484
    %1575 = vmatpush.msra.mxu0 %v1476
    %1576 = vmatpush.msra.mxu0 %v1468
    %1577 = vmatpush.msra.mxu0 %v1460
    %1578 = vmatpush.msra.mxu0 %v1452
    %1579 = vmatpush.msra.mxu0 %v1444
    %1580 = vmatpush.msra.mxu0 %v1436
    %1581 = vmatpush.msra.mxu0 %v1428
    %1582 = vmatpush.msra.mxu0 %v1420
    %1583 = vmatpush.msra.mxu0 %v1412
    %1584 = vmatpush.msra.mxu0 %v1404
    %1585 = vmatmul.f32.gmra.mxu0 %v1080
    %v1586 = vpop.f32.mrf.mxu0
    %v1587 = vadd.f32 %v1534, %v1586
    %1588 = vdwg.mxu0
    %1589 = vmatpush.msra.mxu0 %v1525
    %1590 = vmatpush.msra.mxu0 %v1517
    %1591 = vmatpush.msra.mxu0 %v1509
    %1592 = vmatpush.msra.mxu0 %v1501
    %1593 = vmatpush.msra.mxu0 %v1493
    %1594 = vmatpush.msra.mxu0 %v1485
    %1595 = vmatpush.msra.mxu0 %v1477
    %1596 = vmatpush.msra.mxu0 %v1469
    %1597 = vmatpush.msra.mxu0 %v1461
    %1598 = vmatpush.msra.mxu0 %v1453
    %1599 = vmatpush.msra.mxu0 %v1445
    %1600 = vmatpush.msra.mxu0 %v1437
    %1601 = vmatpush.msra.mxu0 %v1429
    %1602 = vmatpush.msra.mxu0 %v1421
    %1603 = vmatpush.msra.mxu0 %v1413
    %1604 = vmatpush.msra.mxu0 %v1405
    %1605 = vmatmul.f32.gmra.mxu0 %v1080
    %v1606 = vpop.f32.mrf.mxu0
    %v1607 = vadd.f32 %v1535, %v1606
    %1608 = vdwg.mxu0
    %1609 = vmatpush.msra.mxu0 %v1526
    %1610 = vmatpush.msra.mxu0 %v1518
    %1611 = vmatpush.msra.mxu0 %v1510
    %1612 = vmatpush.msra.mxu0 %v1502
    %1613 = vmatpush.msra.mxu0 %v1494
    %1614 = vmatpush.msra.mxu0 %v1486
    %1615 = vmatpush.msra.mxu0 %v1478
    %1616 = vmatpush.msra.mxu0 %v1470
    %1617 = vmatpush.msra.mxu0 %v1462
    %1618 = vmatpush.msra.mxu0 %v1454
    %1619 = vmatpush.msra.mxu0 %v1446
    %1620 = vmatpush.msra.mxu0 %v1438
    %1621 = vmatpush.msra.mxu0 %v1430
    %1622 = vmatpush.msra.mxu0 %v1422
    %1623 = vmatpush.msra.mxu0 %v1414
    %1624 = vmatpush.msra.mxu0 %v1406
    %1625 = vmatmul.f32.gmra.mxu0 %v1080
    %v1626 = vpop.f32.mrf.mxu0
    %v1627 = vadd.f32 %v1536, %v1626
    %1628 = vdwg.mxu0
    %1629 = vmatpush.msra.mxu0 %v1527
    %1630 = vmatpush.msra.mxu0 %v1519
    %1631 = vmatpush.msra.mxu0 %v1511
    %1632 = vmatpush.msra.mxu0 %v1503
    %1633 = vmatpush.msra.mxu0 %v1495
    %1634 = vmatpush.msra.mxu0 %v1487
    %1635 = vmatpush.msra.mxu0 %v1479
    %1636 = vmatpush.msra.mxu0 %v1471
    %1637 = vmatpush.msra.mxu0 %v1463
    %1638 = vmatpush.msra.mxu0 %v1455
    %1639 = vmatpush.msra.mxu0 %v1447
    %1640 = vmatpush.msra.mxu0 %v1439
    %1641 = vmatpush.msra.mxu0 %v1431
    %1642 = vmatpush.msra.mxu0 %v1423
    %1643 = vmatpush.msra.mxu0 %v1415
    %1644 = vmatpush.msra.mxu0 %v1407
    %1645 = vmatmul.f32.gmra.mxu0 %v1080
    %v1646 = vpop.f32.mrf.mxu0
    %v1647 = vadd.f32 %v1537, %v1646
    %1648 = vdwg.mxu0
    %1649 = vmatpush.msra.mxu0 %v1528
    %1650 = vmatpush.msra.mxu0 %v1520
    %1651 = vmatpush.msra.mxu0 %v1512
    %1652 = vmatpush.msra.mxu0 %v1504
    %1653 = vmatpush.msra.mxu0 %v1496
    %1654 = vmatpush.msra.mxu0 %v1488
    %1655 = vmatpush.msra.mxu0 %v1480
    %1656 = vmatpush.msra.mxu0 %v1472
    %1657 = vmatpush.msra.mxu0 %v1464
    %1658 = vmatpush.msra.mxu0 %v1456
    %1659 = vmatpush.msra.mxu0 %v1448
    %1660 = vmatpush.msra.mxu0 %v1440
    %1661 = vmatpush.msra.mxu0 %v1432
    %1662 = vmatpush.msra.mxu0 %v1424
    %1663 = vmatpush.msra.mxu0 %v1416
    %1664 = vmatpush.msra.mxu0 %v1408
    %1665 = vmatmul.f32.gmra.mxu0 %v1080
    %v1666 = vpop.f32.mrf.mxu0
    %v1667 = vadd.f32 %v1538, %v1666
    %1668 = vdwg.mxu0
    %1669 = vmatpush.msra.mxu0 %v1529
    %1670 = vmatpush.msra.mxu0 %v1521
    %1671 = vmatpush.msra.mxu0 %v1513
    %1672 = vmatpush.msra.mxu0 %v1505
    %1673 = vmatpush.msra.mxu0 %v1497
    %1674 = vmatpush.msra.mxu0 %v1489
    %1675 = vmatpush.msra.mxu0 %v1481
    %1676 = vmatpush.msra.mxu0 %v1473
    %1677 = vmatpush.msra.mxu0 %v1465
    %1678 = vmatpush.msra.mxu0 %v1457
    %1679 = vmatpush.msra.mxu0 %v1449
    %1680 = vmatpush.msra.mxu0 %v1441
    %1681 = vmatpush.msra.mxu0 %v1433
    %1682 = vmatpush.msra.mxu0 %v1425
    %1683 = vmatpush.msra.mxu0 %v1417
    %1684 = vmatpush.msra.mxu0 %v1409
    %1685 = vmatmul.f32.gmra.mxu0 %v1080
    %v1686 = vpop.f32.mrf.mxu0
    %v1687 = vadd.f32 %v1539, %v1686
    %1688 = vdwg.mxu0
    %1689 = vmatpush.msra.mxu0 %v1530
    %1690 = vmatpush.msra.mxu0 %v1522
    %1691 = vmatpush.msra.mxu0 %v1514
    %1692 = vmatpush.msra.mxu0 %v1506
    %1693 = vmatpush.msra.mxu0 %v1498
    %1694 = vmatpush.msra.mxu0 %v1490
    %1695 = vmatpush.msra.mxu0 %v1482
    %1696 = vmatpush.msra.mxu0 %v1474
    %1697 = vmatpush.msra.mxu0 %v1466
    %1698 = vmatpush.msra.mxu0 %v1458
    %1699 = vmatpush.msra.mxu0 %v1450
    %1700 = vmatpush.msra.mxu0 %v1442
    %1701 = vmatpush.msra.mxu0 %v1434
    %1702 = vmatpush.msra.mxu0 %v1426
    %1703 = vmatpush.msra.mxu0 %v1418
    %1704 = vmatpush.msra.mxu0 %v1410
    %1705 = vmatmul.f32.gmra.mxu0 %v1080
    %v1706 = vpop.f32.mrf.mxu0
    %v1707 = vadd.f32 %v1540, %v1706
    %1708 = vdwg.mxu0
    %v1709 = vtanh.pop %v1567
    %v1710 = vtanh.pop %v1587
    %v1711 = vtanh.pop %v1607
    %v1712 = vtanh.pop %v1627
    %v1713 = vtanh.pop %v1647
    %v1714 = vtanh.pop %v1667
    %v1715 = vtanh.pop %v1687
    %v1716 = vtanh.pop %v1707
    %1717 = vst [vmem:[%s9 + $0x40] sm:$0xff] %v1709
    %1718 = vst [vmem:[%s9 + $0x48] sm:$0xff] %v1710
    %1719 = vst [vmem:[%s9 + $0x50] sm:$0xff] %v1711
    %1720 = vst [vmem:[%s9 + $0x58] sm:$0xff] %v1712
    %1721 = vst [vmem:[%s9 + $0x60] sm:$0xff] %v1713
    %1722 = vst [vmem:[%s9 + $0x68] sm:$0xff] %v1714
    %1723 = vst [vmem:[%s9 + $0x70] sm:$0xff] %v1715
    %1724 = vst [vmem:[%s9 + $0x78] sm:$0xff] %v1716
    %v1725 = vld [vmem:[#allocation7 + $0x80] sm:$0xff]
    %v1726 = vld [vmem:[#allocation7 + $0x88] sm:$0xff]
    %v1727 = vld [vmem:[#allocation7 + $0x90] sm:$0xff]
    %v1728 = vld [vmem:[#allocation7 + $0x98] sm:$0xff]
    %v1729 = vld [vmem:[#allocation7 + $0xa0] sm:$0xff]
    %v1730 = vld [vmem:[#allocation7 + $0xa8] sm:$0xff]
    %v1731 = vld [vmem:[#allocation7 + $0xb0] sm:$0xff]
    %v1732 = vld [vmem:[#allocation7 + $0xb8] sm:$0xff]
    %v1733 = vld [vmem:[#allocation7 + $0x140] sm:$0xff]
    %v1734 = vld [vmem:[#allocation7 + $0x148] sm:$0xff]
    %v1735 = vld [vmem:[#allocation7 + $0x150] sm:$0xff]
    %v1736 = vld [vmem:[#allocation7 + $0x158] sm:$0xff]
    %v1737 = vld [vmem:[#allocation7 + $0x160] sm:$0xff]
    %v1738 = vld [vmem:[#allocation7 + $0x168] sm:$0xff]
    %v1739 = vld [vmem:[#allocation7 + $0x170] sm:$0xff]
    %v1740 = vld [vmem:[#allocation7 + $0x178] sm:$0xff]
    %v1741 = vld [vmem:[#allocation7 + $0x200] sm:$0xff]
    %v1742 = vld [vmem:[#allocation7 + $0x208] sm:$0xff]
    %v1743 = vld [vmem:[#allocation7 + $0x210] sm:$0xff]
    %v1744 = vld [vmem:[#allocation7 + $0x218] sm:$0xff]
    %v1745 = vld [vmem:[#allocation7 + $0x220] sm:$0xff]
    %v1746 = vld [vmem:[#allocation7 + $0x228] sm:$0xff]
    %v1747 = vld [vmem:[#allocation7 + $0x230] sm:$0xff]
    %v1748 = vld [vmem:[#allocation7 + $0x238] sm:$0xff]
    %v1749 = vld [vmem:[#allocation7 + $0x2c0] sm:$0xff]
    %v1750 = vld [vmem:[#allocation7 + $0x2c8] sm:$0xff]
    %v1751 = vld [vmem:[#allocation7 + $0x2d0] sm:$0xff]
    %v1752 = vld [vmem:[#allocation7 + $0x2d8] sm:$0xff]
    %v1753 = vld [vmem:[#allocation7 + $0x2e0] sm:$0xff]
    %v1754 = vld [vmem:[#allocation7 + $0x2e8] sm:$0xff]
    %v1755 = vld [vmem:[#allocation7 + $0x2f0] sm:$0xff]
    %v1756 = vld [vmem:[#allocation7 + $0x2f8] sm:$0xff]
    %v1757 = vld [vmem:[#allocation7 + $0x380] sm:$0xff]
    %v1758 = vld [vmem:[#allocation7 + $0x388] sm:$0xff]
    %v1759 = vld [vmem:[#allocation7 + $0x390] sm:$0xff]
    %v1760 = vld [vmem:[#allocation7 + $0x398] sm:$0xff]
    %v1761 = vld [vmem:[#allocation7 + $0x3a0] sm:$0xff]
    %v1762 = vld [vmem:[#allocation7 + $0x3a8] sm:$0xff]
    %v1763 = vld [vmem:[#allocation7 + $0x3b0] sm:$0xff]
    %v1764 = vld [vmem:[#allocation7 + $0x3b8] sm:$0xff]
    %v1765 = vld [vmem:[#allocation7 + $0x440] sm:$0xff]
    %v1766 = vld [vmem:[#allocation7 + $0x448] sm:$0xff]
    %v1767 = vld [vmem:[#allocation7 + $0x450] sm:$0xff]
    %v1768 = vld [vmem:[#allocation7 + $0x458] sm:$0xff]
    %v1769 = vld [vmem:[#allocation7 + $0x460] sm:$0xff]
    %v1770 = vld [vmem:[#allocation7 + $0x468] sm:$0xff]
    %v1771 = vld [vmem:[#allocation7 + $0x470] sm:$0xff]
    %v1772 = vld [vmem:[#allocation7 + $0x478] sm:$0xff]
    %v1773 = vld [vmem:[#allocation7 + $0x500] sm:$0xff]
    %v1774 = vld [vmem:[#allocation7 + $0x508] sm:$0xff]
    %v1775 = vld [vmem:[#allocation7 + $0x510] sm:$0xff]
    %v1776 = vld [vmem:[#allocation7 + $0x518] sm:$0xff]
    %v1777 = vld [vmem:[#allocation7 + $0x520] sm:$0xff]
    %v1778 = vld [vmem:[#allocation7 + $0x528] sm:$0xff]
    %v1779 = vld [vmem:[#allocation7 + $0x530] sm:$0xff]
    %v1780 = vld [vmem:[#allocation7 + $0x538] sm:$0xff]
    %v1781 = vld [vmem:[#allocation7 + $0x5c0] sm:$0xff]
    %v1782 = vld [vmem:[#allocation7 + $0x5c8] sm:$0xff]
    %v1783 = vld [vmem:[#allocation7 + $0x5d0] sm:$0xff]
    %v1784 = vld [vmem:[#allocation7 + $0x5d8] sm:$0xff]
    %v1785 = vld [vmem:[#allocation7 + $0x5e0] sm:$0xff]
    %v1786 = vld [vmem:[#allocation7 + $0x5e8] sm:$0xff]
    %v1787 = vld [vmem:[#allocation7 + $0x5f0] sm:$0xff]
    %v1788 = vld [vmem:[#allocation7 + $0x5f8] sm:$0xff]
    %v1789 = vld [vmem:[#allocation7 + $0x680] sm:$0xff]
    %v1790 = vld [vmem:[#allocation7 + $0x688] sm:$0xff]
    %v1791 = vld [vmem:[#allocation7 + $0x690] sm:$0xff]
    %v1792 = vld [vmem:[#allocation7 + $0x698] sm:$0xff]
    %v1793 = vld [vmem:[#allocation7 + $0x6a0] sm:$0xff]
    %v1794 = vld [vmem:[#allocation7 + $0x6a8] sm:$0xff]
    %v1795 = vld [vmem:[#allocation7 + $0x6b0] sm:$0xff]
    %v1796 = vld [vmem:[#allocation7 + $0x6b8] sm:$0xff]
    %v1797 = vld [vmem:[#allocation7 + $0x740] sm:$0xff]
    %v1798 = vld [vmem:[#allocation7 + $0x748] sm:$0xff]
    %v1799 = vld [vmem:[#allocation7 + $0x750] sm:$0xff]
    %v1800 = vld [vmem:[#allocation7 + $0x758] sm:$0xff]
    %v1801 = vld [vmem:[#allocation7 + $0x760] sm:$0xff]
    %v1802 = vld [vmem:[#allocation7 + $0x768] sm:$0xff]
    %v1803 = vld [vmem:[#allocation7 + $0x770] sm:$0xff]
    %v1804 = vld [vmem:[#allocation7 + $0x778] sm:$0xff]
    %v1805 = vld [vmem:[#allocation7 + $0x800] sm:$0xff]
    %v1806 = vld [vmem:[#allocation7 + $0x808] sm:$0xff]
    %v1807 = vld [vmem:[#allocation7 + $0x810] sm:$0xff]
    %v1808 = vld [vmem:[#allocation7 + $0x818] sm:$0xff]
    %v1809 = vld [vmem:[#allocation7 + $0x820] sm:$0xff]
    %v1810 = vld [vmem:[#allocation7 + $0x828] sm:$0xff]
    %v1811 = vld [vmem:[#allocation7 + $0x830] sm:$0xff]
    %v1812 = vld [vmem:[#allocation7 + $0x838] sm:$0xff]
    %v1813 = vld [vmem:[#allocation7 + $0x8c0] sm:$0xff]
    %v1814 = vld [vmem:[#allocation7 + $0x8c8] sm:$0xff]
    %v1815 = vld [vmem:[#allocation7 + $0x8d0] sm:$0xff]
    %v1816 = vld [vmem:[#allocation7 + $0x8d8] sm:$0xff]
    %v1817 = vld [vmem:[#allocation7 + $0x8e0] sm:$0xff]
    %v1818 = vld [vmem:[#allocation7 + $0x8e8] sm:$0xff]
    %v1819 = vld [vmem:[#allocation7 + $0x8f0] sm:$0xff]
    %v1820 = vld [vmem:[#allocation7 + $0x8f8] sm:$0xff]
    %v1821 = vld [vmem:[#allocation7 + $0x980] sm:$0xff]
    %v1822 = vld [vmem:[#allocation7 + $0x988] sm:$0xff]
    %v1823 = vld [vmem:[#allocation7 + $0x990] sm:$0xff]
    %v1824 = vld [vmem:[#allocation7 + $0x998] sm:$0xff]
    %v1825 = vld [vmem:[#allocation7 + $0x9a0] sm:$0xff]
    %v1826 = vld [vmem:[#allocation7 + $0x9a8] sm:$0xff]
    %v1827 = vld [vmem:[#allocation7 + $0x9b0] sm:$0xff]
    %v1828 = vld [vmem:[#allocation7 + $0x9b8] sm:$0xff]
    %v1829 = vld [vmem:[#allocation7 + $0xa40] sm:$0xff]
    %v1830 = vld [vmem:[#allocation7 + $0xa48] sm:$0xff]
    %v1831 = vld [vmem:[#allocation7 + $0xa50] sm:$0xff]
    %v1832 = vld [vmem:[#allocation7 + $0xa58] sm:$0xff]
    %v1833 = vld [vmem:[#allocation7 + $0xa60] sm:$0xff]
    %v1834 = vld [vmem:[#allocation7 + $0xa68] sm:$0xff]
    %v1835 = vld [vmem:[#allocation7 + $0xa70] sm:$0xff]
    %v1836 = vld [vmem:[#allocation7 + $0xa78] sm:$0xff]
    %v1837 = vld [vmem:[#allocation7 + $0xb00] sm:$0xff]
    %v1838 = vld [vmem:[#allocation7 + $0xb08] sm:$0xff]
    %v1839 = vld [vmem:[#allocation7 + $0xb10] sm:$0xff]
    %v1840 = vld [vmem:[#allocation7 + $0xb18] sm:$0xff]
    %v1841 = vld [vmem:[#allocation7 + $0xb20] sm:$0xff]
    %v1842 = vld [vmem:[#allocation7 + $0xb28] sm:$0xff]
    %v1843 = vld [vmem:[#allocation7 + $0xb30] sm:$0xff]
    %v1844 = vld [vmem:[#allocation7 + $0xb38] sm:$0xff]
    %v1845 = vld [vmem:[#allocation7 + $0xbc0] sm:$0xff]
    %v1846 = vld [vmem:[#allocation7 + $0xbc8] sm:$0xff]
    %v1847 = vld [vmem:[#allocation7 + $0xbd0] sm:$0xff]
    %v1848 = vld [vmem:[#allocation7 + $0xbd8] sm:$0xff]
    %v1849 = vld [vmem:[#allocation7 + $0xbe0] sm:$0xff]
    %v1850 = vld [vmem:[#allocation7 + $0xbe8] sm:$0xff]
    %v1851 = vld [vmem:[#allocation7 + $0xbf0] sm:$0xff]
    %v1852 = vld [vmem:[#allocation7 + $0xbf8] sm:$0xff]
    %v1853 = vld [vmem:[#allocation9 + $0x10] sm:$0xff]
    %v1855 = vperm.slane %v1853, 0
    %v1856 = vperm.slane %v1853, 1
    %v1857 = vperm.slane %v1853, 2
    %v1858 = vperm.slane %v1853, 3
    %v1859 = vperm.slane %v1853, 4
    %v1860 = vperm.slane %v1853, 5
    %v1861 = vperm.slane %v1853, 6
    %v1862 = vperm.slane %v1853, 7
    %1871 = vmatpush.msra.mxu0 %v1845
    %1872 = vmatpush.msra.mxu0 %v1837
    %1873 = vmatpush.msra.mxu0 %v1829
    %1874 = vmatpush.msra.mxu0 %v1821
    %1875 = vmatpush.msra.mxu0 %v1813
    %1876 = vmatpush.msra.mxu0 %v1805
    %1877 = vmatpush.msra.mxu0 %v1797
    %1878 = vmatpush.msra.mxu0 %v1789
    %1879 = vmatpush.msra.mxu0 %v1781
    %1880 = vmatpush.msra.mxu0 %v1773
    %1881 = vmatpush.msra.mxu0 %v1765
    %1882 = vmatpush.msra.mxu0 %v1757
    %1883 = vmatpush.msra.mxu0 %v1749
    %1884 = vmatpush.msra.mxu0 %v1741
    %1885 = vmatpush.msra.mxu0 %v1733
    %1886 = vmatpush.msra.mxu0 %v1725
    %1887 = vmatmul.f32.gmra.mxu0 %v1080
    %v1888 = vpop.f32.mrf.mxu0
    %v1889 = vadd.f32 %v1855, %v1888
    %1890 = vdwg.mxu0
    %1891 = vmatpush.msra.mxu0 %v1846
    %1892 = vmatpush.msra.mxu0 %v1838
    %1893 = vmatpush.msra.mxu0 %v1830
    %1894 = vmatpush.msra.mxu0 %v1822
    %1895 = vmatpush.msra.mxu0 %v1814
    %1896 = vmatpush.msra.mxu0 %v1806
    %1897 = vmatpush.msra.mxu0 %v1798
    %1898 = vmatpush.msra.mxu0 %v1790
    %1899 = vmatpush.msra.mxu0 %v1782
    %1900 = vmatpush.msra.mxu0 %v1774
    %1901 = vmatpush.msra.mxu0 %v1766
    %1902 = vmatpush.msra.mxu0 %v1758
    %1903 = vmatpush.msra.mxu0 %v1750
    %1904 = vmatpush.msra.mxu0 %v1742
    %1905 = vmatpush.msra.mxu0 %v1734
    %1906 = vmatpush.msra.mxu0 %v1726
    %1907 = vmatmul.f32.gmra.mxu0 %v1080
    %v1908 = vpop.f32.mrf.mxu0
    %v1909 = vadd.f32 %v1856, %v1908
    %1910 = vdwg.mxu0
    %1911 = vmatpush.msra.mxu0 %v1847
    %1912 = vmatpush.msra.mxu0 %v1839
    %1913 = vmatpush.msra.mxu0 %v1831
    %1914 = vmatpush.msra.mxu0 %v1823
    %1915 = vmatpush.msra.mxu0 %v1815
    %1916 = vmatpush.msra.mxu0 %v1807
    %1917 = vmatpush.msra.mxu0 %v1799
    %1918 = vmatpush.msra.mxu0 %v1791
    %1919 = vmatpush.msra.mxu0 %v1783
    %1920 = vmatpush.msra.mxu0 %v1775
    %1921 = vmatpush.msra.mxu0 %v1767
    %1922 = vmatpush.msra.mxu0 %v1759
    %1923 = vmatpush.msra.mxu0 %v1751
    %1924 = vmatpush.msra.mxu0 %v1743
    %1925 = vmatpush.msra.mxu0 %v1735
    %1926 = vmatpush.msra.mxu0 %v1727
    %1927 = vmatmul.f32.gmra.mxu0 %v1080
    %v1928 = vpop.f32.mrf.mxu0
    %v1929 = vadd.f32 %v1857, %v1928
    %1930 = vdwg.mxu0
    %1931 = vmatpush.msra.mxu0 %v1848
    %1932 = vmatpush.msra.mxu0 %v1840
    %1933 = vmatpush.msra.mxu0 %v1832
    %1934 = vmatpush.msra.mxu0 %v1824
    %1935 = vmatpush.msra.mxu0 %v1816
    %1936 = vmatpush.msra.mxu0 %v1808
    %1937 = vmatpush.msra.mxu0 %v1800
    %1938 = vmatpush.msra.mxu0 %v1792
    %1939 = vmatpush.msra.mxu0 %v1784
    %1940 = vmatpush.msra.mxu0 %v1776
    %1941 = vmatpush.msra.mxu0 %v1768
    %1942 = vmatpush.msra.mxu0 %v1760
    %1943 = vmatpush.msra.mxu0 %v1752
    %1944 = vmatpush.msra.mxu0 %v1744
    %1945 = vmatpush.msra.mxu0 %v1736
    %1946 = vmatpush.msra.mxu0 %v1728
    %1947 = vmatmul.f32.gmra.mxu0 %v1080
    %v1948 = vpop.f32.mrf.mxu0
    %v1949 = vadd.f32 %v1858, %v1948
    %1950 = vdwg.mxu0
    %1951 = vmatpush.msra.mxu0 %v1849
    %1952 = vmatpush.msra.mxu0 %v1841
    %1953 = vmatpush.msra.mxu0 %v1833
    %1954 = vmatpush.msra.mxu0 %v1825
    %1955 = vmatpush.msra.mxu0 %v1817
    %1956 = vmatpush.msra.mxu0 %v1809
    %1957 = vmatpush.msra.mxu0 %v1801
    %1958 = vmatpush.msra.mxu0 %v1793
    %1959 = vmatpush.msra.mxu0 %v1785
    %1960 = vmatpush.msra.mxu0 %v1777
    %1961 = vmatpush.msra.mxu0 %v1769
    %1962 = vmatpush.msra.mxu0 %v1761
    %1963 = vmatpush.msra.mxu0 %v1753
    %1964 = vmatpush.msra.mxu0 %v1745
    %1965 = vmatpush.msra.mxu0 %v1737
    %1966 = vmatpush.msra.mxu0 %v1729
    %1967 = vmatmul.f32.gmra.mxu0 %v1080
    %v1968 = vpop.f32.mrf.mxu0
    %v1969 = vadd.f32 %v1859, %v1968
    %1970 = vdwg.mxu0
    %1971 = vmatpush.msra.mxu0 %v1850
    %1972 = vmatpush.msra.mxu0 %v1842
    %1973 = vmatpush.msra.mxu0 %v1834
    %1974 = vmatpush.msra.mxu0 %v1826
    %1975 = vmatpush.msra.mxu0 %v1818
    %1976 = vmatpush.msra.mxu0 %v1810
    %1977 = vmatpush.msra.mxu0 %v1802
    %1978 = vmatpush.msra.mxu0 %v1794
    %1979 = vmatpush.msra.mxu0 %v1786
    %1980 = vmatpush.msra.mxu0 %v1778
    %1981 = vmatpush.msra.mxu0 %v1770
    %1982 = vmatpush.msra.mxu0 %v1762
    %1983 = vmatpush.msra.mxu0 %v1754
    %1984 = vmatpush.msra.mxu0 %v1746
    %1985 = vmatpush.msra.mxu0 %v1738
    %1986 = vmatpush.msra.mxu0 %v1730
    %1987 = vmatmul.f32.gmra.mxu0 %v1080
    %v1988 = vpop.f32.mrf.mxu0
    %v1989 = vadd.f32 %v1860, %v1988
    %1990 = vdwg.mxu0
    %1991 = vmatpush.msra.mxu0 %v1851
    %1992 = vmatpush.msra.mxu0 %v1843
    %1993 = vmatpush.msra.mxu0 %v1835
    %1994 = vmatpush.msra.mxu0 %v1827
    %1995 = vmatpush.msra.mxu0 %v1819
    %1996 = vmatpush.msra.mxu0 %v1811
    %1997 = vmatpush.msra.mxu0 %v1803
    %1998 = vmatpush.msra.mxu0 %v1795
    %1999 = vmatpush.msra.mxu0 %v1787
    %2000 = vmatpush.msra.mxu0 %v1779
    %2001 = vmatpush.msra.mxu0 %v1771
    %2002 = vmatpush.msra.mxu0 %v1763
    %2003 = vmatpush.msra.mxu0 %v1755
    %2004 = vmatpush.msra.mxu0 %v1747
    %2005 = vmatpush.msra.mxu0 %v1739
    %2006 = vmatpush.msra.mxu0 %v1731
    %2007 = vmatmul.f32.gmra.mxu0 %v1080
    %v2008 = vpop.f32.mrf.mxu0
    %v2009 = vadd.f32 %v1861, %v2008
    %2010 = vdwg.mxu0
    %2011 = vmatpush.msra.mxu0 %v1852
    %2012 = vmatpush.msra.mxu0 %v1844
    %2013 = vmatpush.msra.mxu0 %v1836
    %2014 = vmatpush.msra.mxu0 %v1828
    %2015 = vmatpush.msra.mxu0 %v1820
    %2016 = vmatpush.msra.mxu0 %v1812
    %2017 = vmatpush.msra.mxu0 %v1804
    %2018 = vmatpush.msra.mxu0 %v1796
    %2019 = vmatpush.msra.mxu0 %v1788
    %2020 = vmatpush.msra.mxu0 %v1780
    %2021 = vmatpush.msra.mxu0 %v1772
    %2022 = vmatpush.msra.mxu0 %v1764
    %2023 = vmatpush.msra.mxu0 %v1756
    %2024 = vmatpush.msra.mxu0 %v1748
    %2025 = vmatpush.msra.mxu0 %v1740
    %2026 = vmatpush.msra.mxu0 %v1732
    %2027 = vmatmul.f32.gmra.mxu0 %v1080
    %v2028 = vpop.f32.mrf.mxu0
    %v2029 = vadd.f32 %v1862, %v2028
    %2030 = vdwg.mxu0
    %v2031 = vtanh.pop %v1889
    %v2032 = vtanh.pop %v1909
    %v2033 = vtanh.pop %v1929
    %v2034 = vtanh.pop %v1949
    %v2035 = vtanh.pop %v1969
    %v2036 = vtanh.pop %v1989
    %v2037 = vtanh.pop %v2009
    %v2038 = vtanh.pop %v2029
    %2039 = vst [vmem:[%s9 + $0x80] sm:$0xff] %v2031
    %2040 = vst [vmem:[%s9 + $0x88] sm:$0xff] %v2032
    %2041 = vst [vmem:[%s9 + $0x90] sm:$0xff] %v2033
    %2042 = vst [vmem:[%s9 + $0x98] sm:$0xff] %v2034
    %2043 = vst [vmem:[%s9 + $0xa0] sm:$0xff] %v2035
    %2044 = vst [vmem:[%s9 + $0xa8] sm:$0xff] %v2036
    %2045 = vst [vmem:[%s9 + $0xb0] sm:$0xff] %v2037
    %2046 = vst [vmem:[%s9 + $0xb8] sm:$0xff] %v2038
    // Predicated region
    $region58: #{autoencoder_forward.1} parent=1 // pred_check
      _
    $region59: #{autoencoder_forward.1} parent=1 // pred_check_branch
      %2048 = sbr.rel (0) target = $region61
    $region60: #{autoencoder_forward.1} parent=1 // pred_region
      _
    $region61: #{autoencoder_forward.1} parent=1 // pred_fallthru
      _
    // Predicated region
    $region62: #{autoencoder_forward.1} parent=1 // pred_check
      _
    $region63: #{autoencoder_forward.1} parent=1 // pred_check_branch
      %2050 = sbr.rel (0) target = $region65
    $region64: #{autoencoder_forward.1} parent=1 // pred_region
      _
    $region65: #{autoencoder_forward.1} parent=1 // pred_fallthru
      _
    // Predicated region
    $region66: #{autoencoder_forward.1} parent=1 // pred_check
      _
    $region67: #{autoencoder_forward.1} parent=1 // pred_check_branch
      %2052 = sbr.rel (0) target = $region69
    $region68: #{autoencoder_forward.1} parent=1 // pred_region
      _
    $region69: #{autoencoder_forward.1} parent=1 // pred_fallthru
      _
    // Predicated region
    $region70: #{autoencoder_forward.1} parent=1 // pred_check
      _
    $region71: #{autoencoder_forward.1} parent=1 // pred_check_branch
      %2054 = sbr.rel (0) target = $region73
    $region72: #{autoencoder_forward.1} parent=1 // pred_region
      _
    $region73: #{autoencoder_forward.1} parent=1 // pred_fallthru
      _
    %2055 = vsyncpa [#allocation3], 1
    %2056 = vsyncpa [#allocation5], 1
    %2057 = vsyncpa [#allocation8], 1

</llo_original>
